<compile_context>
chip_gen: v5e
topology: v5e:2x2
jax: 0.10.0
libtpu: 0.0.40
codegen_flags: <defaults>
</compile_context>

<pallas_src>
import jax
import jax.numpy as jnp
from jax.experimental import pallas as pl
from jax.experimental.pallas import tpu as pltpu


def cascaded_dilated_conv(x_nchw, weights, dilation_rates):
    """x_nchw: (B, C, H, W) float32.
    weights: list of (C, C, 3, 3) arrays in PyTorch (out, in, kh, kw) layout,
    one per dilation rate."""
    B, C, H, W = x_nchw.shape
    n_convs = len(weights)
    assert len(dilation_rates) == n_convs
    for w in weights:
        assert w.shape == (C, C, 3, 3), (
            "CascadedDilatedConv chains the convs, so in_channels must equal "
            "out_channels")
    HW = H * W

    # ---------------- host-side layout prep ----------------
    x_flat = x_nchw.reshape(B, C, HW)            # spatial -> lane axis

    # (Cout, Cin, 3, 3) -> (n_convs, 9, Cout, Cin); tap index t = kh*3 + kw.
    w_stacked = jnp.stack(
        [w.transpose(2, 3, 0, 1).reshape(9, C, C) for w in weights], axis=0)

    # Per-(conv, tap) validity masks for the implicit zero padding.
    mask_rows = []
    for d in dilation_rates:
        for kh in range(3):
            for kw in range(3):
                hh = jnp.arange(H)[:, None] + d * (kh - 1)
                ww = jnp.arange(W)[None, :] + d * (kw - 1)
                valid = (hh >= 0) & (hh < H) & (ww >= 0) & (ww < W)
                mask_rows.append(valid.astype(jnp.float32).reshape(HW))
    masks = jnp.stack(mask_rows, axis=0).reshape(n_convs * 9, 1, HW)

    # Flat-axis padding, rounded up to a lane multiple so the activation store
    # into the scratch stays lane-aligned.
    max_shift = max(dilation_rates) * (W + 1)
    pad = ((max_shift + 127) // 128) * 128

    # ---------------- kernel ----------------
    def kernel(x_ref, w_ref, m_ref, o_ref, scratch_ref):
        # x_ref: (1, C, HW)            w_ref: (n_convs, 9, Cout, Cin)
        # m_ref: (n_convs*9, 1, HW)    o_ref: (1, C, HW)
        # scratch_ref: (C, HW + 2*pad) zero-padded staging buffer (VMEM).
        scratch_ref[...] = jnp.zeros_like(scratch_ref)
        act = x_ref[0].astype(jnp.float32)                     # (C, HW)
        for ci, d in enumerate(dilation_rates):
            scratch_ref[:, pad:pad + HW] = act
            acc = jnp.zeros((C, HW), jnp.float32)
            for kh in range(3):
                for kw in range(3):
                    t = kh * 3 + kw
                    shift = d * (kh - 1) * W + d * (kw - 1)
                    start = pad + shift
                    tap = scratch_ref[:, start:start + HW]     # (Cin, HW)
                    tap = tap * m_ref[ci * 9 + t]              # zero out-of-range
                    wt = w_ref[ci, t]                          # (Cout, Cin)
                    acc = acc + jnp.dot(
                        wt, tap, preferred_element_type=jnp.float32)
            act = acc                                          # feeds next conv
        o_ref[0] = act.astype(o_ref.dtype)

    flops = 2 * B * HW * 9 * C * C * n_convs
    bytes_accessed = 4 * (x_flat.size + B * C * HW + w_stacked.size + masks.size)

    out_flat = pl.pallas_call(
        kernel,
        out_shape=jax.ShapeDtypeStruct((B, C, HW), x_nchw.dtype),
        grid_spec=pltpu.PrefetchScalarGridSpec(
            num_scalar_prefetch=0,
            grid=(B,),
            in_specs=[
                pl.BlockSpec((1, C, HW), lambda b: (b, 0, 0)),
                pl.BlockSpec((n_convs, 9, C, C), lambda b: (0, 0, 0, 0)),
                pl.BlockSpec((n_convs * 9, 1, HW), lambda b: (0, 0, 0)),
            ],
            out_specs=pl.BlockSpec((1, C, HW), lambda b: (b, 0, 0)),
            scratch_shapes=[pltpu.VMEM((C, HW + 2 * pad), jnp.float32)],
        ),
        compiler_params=pltpu.CompilerParams(
            dimension_semantics=("parallel",)),
        cost_estimate=pl.CostEstimate(
            flops=flops, transcendentals=0, bytes_accessed=bytes_accessed),
    )(x_flat, w_stacked, masks)

    return out_flat.reshape(B, C, H, W)


def cascaded_dilated_conv_reference(x_nchw, weights, dilation_rates):
    """Pure-JAX reference mirroring the PyTorch forward."""
    out = x_nchw
    for w, d in zip(weights, dilation_rates):
        out = jax.lax.conv_general_dilated(
            out, w,
            window_strides=(1, 1),
            padding=((d, d), (d, d)),
            rhs_dilation=(d, d),
            dimension_numbers=("NCHW", "OIHW", "NCHW"),
            precision=jax.lax.Precision.HIGHEST)
    return out


if __name__ == "__main__":
    # Small shapes consistent with CascadedDilatedConv(in_channels=4,
    # out_channels=4, dilation_rates=[1, 2]).  H*W = 256 keeps stores lane-dense.
    B, C, H, W = 2, 4, 16, 16
    dilation_rates = [1, 2]

    key = jax.random.PRNGKey(0)
    kx, kw1, kw2 = jax.random.split(key, 3)

    x = jax.random.normal(kx, (B, C, H, W), dtype=jnp.float32)
    w1 = jax.random.normal(kw1, (C, C, 3, 3), dtype=jnp.float32) * 0.1
    w2 = jax.random.normal(kw2, (C, C, 3, 3), dtype=jnp.float32) * 0.1
    weights = [w1, w2]

    out = jax.block_until_ready(
        cascaded_dilated_conv(x, weights, dilation_rates))
    ref = jax.block_until_ready(
        cascaded_dilated_conv_reference(x, weights, dilation_rates))

    assert out.shape == (B, C, H, W)
    assert jnp.allclose(out, ref, atol=1e-3, rtol=1e-3), "mismatch vs reference"
    print("KERNEL_OK")
</pallas_src>

<mosaic_0001>
module attributes {stable_mosaic.version = 11 : i64} {
  func.func @kernel(%arg0: i32, %arg1: memref<1x4x256xf32, #tpu.memory_space<vmem>>, %arg2: memref<2x9x4x4xf32, #tpu.memory_space<vmem>>, %arg3: memref<18x1x256xf32, #tpu.memory_space<vmem>>, %arg4: memref<1x4x256xf32, #tpu.memory_space<vmem>>, %arg5: memref<4x512xf32, #tpu.memory_space<vmem>>) attributes {dimension_semantics = [#tpu.dimension_semantics<parallel>], iteration_bounds = array<i64: 2>, scalar_prefetch = 0 : i64, scratch_operands = 1 : i64, tpu.core_type = #tpu.core_type<tc>, window_params = [{transform_indices = @transform_0, window_bounds = array<i64: 1, 4, 256>}, {pipeline_mode = #tpu.pipeline_mode<synchronous>, transform_indices = @transform_1, window_bounds = array<i64: 2, 9, 4, 4>}, {pipeline_mode = #tpu.pipeline_mode<synchronous>, transform_indices = @transform_2, window_bounds = array<i64: 18, 1, 256>}, {transform_indices = @transform_3, window_bounds = array<i64: 1, 4, 256>}]} {
    %cst = arith.constant 0.000000e+00 : f32
    %0 = vector.broadcast %cst : f32 to vector<4x512xf32>
    %c0 = arith.constant 0 : index
    %c0_0 = arith.constant 0 : index
    %1 = vector.load %arg5[%c0, %c0_0] : memref<4x512xf32, #tpu.memory_space<vmem>>, vector<4x512xf32>
    tpu.vector_store %arg5[%c0, %c0_0], %0 {strides = array<i32>} : memref<4x512xf32, #tpu.memory_space<vmem>>, vector<4x512xf32>,
    %c0_1 = arith.constant 0 : index
    %c0_2 = arith.constant 0 : index
    %c0_3 = arith.constant 0 : index
    %2 = vector.load %arg1[%c0_1, %c0_2, %c0_3] : memref<1x4x256xf32, #tpu.memory_space<vmem>>, vector<1x4x256xf32>
    %3 = vector.shape_cast %2 : vector<1x4x256xf32> to vector<4x256xf32>
    %c0_4 = arith.constant 0 : index
    %c128 = arith.constant 128 : index
    %4 = vector.load %arg5[%c0_4, %c128] : memref<4x512xf32, #tpu.memory_space<vmem>>, vector<4x256xf32>
    tpu.vector_store %arg5[%c0_4, %c128], %3 {strides = array<i32>} : memref<4x512xf32, #tpu.memory_space<vmem>>, vector<4x256xf32>,
    %cst_5 = arith.constant 0.000000e+00 : f32
    %5 = vector.broadcast %cst_5 : f32 to vector<4x256xf32>
    %c0_6 = arith.constant 0 : index
    %c111 = arith.constant 111 : index
    %6 = vector.load %arg5[%c0_6, %c111] : memref<4x512xf32, #tpu.memory_space<vmem>>, vector<4x256xf32>
    %c0_7 = arith.constant 0 : index
    %c0_8 = arith.constant 0 : index
    %c0_9 = arith.constant 0 : index
    %7 = vector.load %arg3[%c0_7, %c0_8, %c0_9] : memref<18x1x256xf32, #tpu.memory_space<vmem>>, vector<1x1x256xf32>
    %8 = vector.shape_cast %7 : vector<1x1x256xf32> to vector<1x256xf32>
    %9 = vector.broadcast %8 : vector<1x256xf32> to vector<4x256xf32>
    %10 = arith.mulf %6, %9 : vector<4x256xf32>
    %c0_10 = arith.constant 0 : index
    %c0_11 = arith.constant 0 : index
    %c0_12 = arith.constant 0 : index
    %c0_13 = arith.constant 0 : index
    %11 = vector.load %arg2[%c0_10, %c0_11, %c0_12, %c0_13] : memref<2x9x4x4xf32, #tpu.memory_space<vmem>>, vector<1x1x4x4xf32>
    %12 = vector.shape_cast %11 : vector<1x1x4x4xf32> to vector<4x4xf32>
    %cst_14 = arith.constant dense<0.000000e+00> : vector<4x256xf32>
    %13 = tpu.matmul %12, %10, %cst_14 {dimension_numbers = #tpu.dot_dimension_numbers<[1], [0], [0], [1], [0, 0, 1, 1], [], []>} : vector<4x4xf32>, vector<4x256xf32>, vector<4x256xf32> -> vector<4x256xf32>
    %14 = arith.addf %5, %13 : vector<4x256xf32>
    %c0_15 = arith.constant 0 : index
    %c112 = arith.constant 112 : index
    %15 = vector.load %arg5[%c0_15, %c112] : memref<4x512xf32, #tpu.memory_space<vmem>>, vector<4x256xf32>
    %c1 = arith.constant 1 : index
    %c0_16 = arith.constant 0 : index
    %c0_17 = arith.constant 0 : index
    %16 = vector.load %arg3[%c1, %c0_16, %c0_17] : memref<18x1x256xf32, #tpu.memory_space<vmem>>, vector<1x1x256xf32>
    %17 = vector.shape_cast %16 : vector<1x1x256xf32> to vector<1x256xf32>
    %18 = vector.broadcast %17 : vector<1x256xf32> to vector<4x256xf32>
    %19 = arith.mulf %15, %18 : vector<4x256xf32>
    %c0_18 = arith.constant 0 : index
    %c1_19 = arith.constant 1 : index
    %c0_20 = arith.constant 0 : index
    %c0_21 = arith.constant 0 : index
    %20 = vector.load %arg2[%c0_18, %c1_19, %c0_20, %c0_21] : memref<2x9x4x4xf32, #tpu.memory_space<vmem>>, vector<1x1x4x4xf32>
    %21 = vector.shape_cast %20 : vector<1x1x4x4xf32> to vector<4x4xf32>
    %cst_22 = arith.constant dense<0.000000e+00> : vector<4x256xf32>
    %22 = tpu.matmul %21, %19, %cst_22 {dimension_numbers = #tpu.dot_dimension_numbers<[1], [0], [0], [1], [0, 0, 1, 1], [], []>} : vector<4x4xf32>, vector<4x256xf32>, vector<4x256xf32> -> vector<4x256xf32>
    %23 = arith.addf %14, %22 : vector<4x256xf32>
    %c0_23 = arith.constant 0 : index
    %c113 = arith.constant 113 : index
    %24 = vector.load %arg5[%c0_23, %c113] : memref<4x512xf32, #tpu.memory_space<vmem>>, vector<4x256xf32>
    %c2 = arith.constant 2 : index
    %c0_24 = arith.constant 0 : index
    %c0_25 = arith.constant 0 : index
    %25 = vector.load %arg3[%c2, %c0_24, %c0_25] : memref<18x1x256xf32, #tpu.memory_space<vmem>>, vector<1x1x256xf32>
    %26 = vector.shape_cast %25 : vector<1x1x256xf32> to vector<1x256xf32>
    %27 = vector.broadcast %26 : vector<1x256xf32> to vector<4x256xf32>
    %28 = arith.mulf %24, %27 : vector<4x256xf32>
    %c0_26 = arith.constant 0 : index
    %c2_27 = arith.constant 2 : index
    %c0_28 = arith.constant 0 : index
    %c0_29 = arith.constant 0 : index
    %29 = vector.load %arg2[%c0_26, %c2_27, %c0_28, %c0_29] : memref<2x9x4x4xf32, #tpu.memory_space<vmem>>, vector<1x1x4x4xf32>
    %30 = vector.shape_cast %29 : vector<1x1x4x4xf32> to vector<4x4xf32>
    %cst_30 = arith.constant dense<0.000000e+00> : vector<4x256xf32>
    %31 = tpu.matmul %30, %28, %cst_30 {dimension_numbers = #tpu.dot_dimension_numbers<[1], [0], [0], [1], [0, 0, 1, 1], [], []>} : vector<4x4xf32>, vector<4x256xf32>, vector<4x256xf32> -> vector<4x256xf32>
    %32 = arith.addf %23, %31 : vector<4x256xf32>
    %c0_31 = arith.constant 0 : index
    %c127 = arith.constant 127 : index
    %33 = vector.load %arg5[%c0_31, %c127] : memref<4x512xf32, #tpu.memory_space<vmem>>, vector<4x256xf32>
    %c3 = arith.constant 3 : index
    %c0_32 = arith.constant 0 : index
    %c0_33 = arith.constant 0 : index
    %34 = vector.load %arg3[%c3, %c0_32, %c0_33] : memref<18x1x256xf32, #tpu.memory_space<vmem>>, vector<1x1x256xf32>
    %35 = vector.shape_cast %34 : vector<1x1x256xf32> to vector<1x256xf32>
    %36 = vector.broadcast %35 : vector<1x256xf32> to vector<4x256xf32>
    %37 = arith.mulf %33, %36 : vector<4x256xf32>
    %c0_34 = arith.constant 0 : index
    %c3_35 = arith.constant 3 : index
    %c0_36 = arith.constant 0 : index
    %c0_37 = arith.constant 0 : index
    %38 = vector.load %arg2[%c0_34, %c3_35, %c0_36, %c0_37] : memref<2x9x4x4xf32, #tpu.memory_space<vmem>>, vector<1x1x4x4xf32>
    %39 = vector.shape_cast %38 : vector<1x1x4x4xf32> to vector<4x4xf32>
    %cst_38 = arith.constant dense<0.000000e+00> : vector<4x256xf32>
    %40 = tpu.matmul %39, %37, %cst_38 {dimension_numbers = #tpu.dot_dimension_numbers<[1], [0], [0], [1], [0, 0, 1, 1], [], []>} : vector<4x4xf32>, vector<4x256xf32>, vector<4x256xf32> -> vector<4x256xf32>
    %41 = arith.addf %32, %40 : vector<4x256xf32>
    %c0_39 = arith.constant 0 : index
    %c128_40 = arith.constant 128 : index
    %42 = vector.load %arg5[%c0_39, %c128_40] : memref<4x512xf32, #tpu.memory_space<vmem>>, vector<4x256xf32>
    %c4 = arith.constant 4 : index
    %c0_41 = arith.constant 0 : index
    %c0_42 = arith.constant 0 : index
    %43 = vector.load %arg3[%c4, %c0_41, %c0_42] : memref<18x1x256xf32, #tpu.memory_space<vmem>>, vector<1x1x256xf32>
    %44 = vector.shape_cast %43 : vector<1x1x256xf32> to vector<1x256xf32>
    %45 = vector.broadcast %44 : vector<1x256xf32> to vector<4x256xf32>
    %46 = arith.mulf %42, %45 : vector<4x256xf32>
    %c0_43 = arith.constant 0 : index
    %c4_44 = arith.constant 4 : index
    %c0_45 = arith.constant 0 : index
    %c0_46 = arith.constant 0 : index
    %47 = vector.load %arg2[%c0_43, %c4_44, %c0_45, %c0_46] : memref<2x9x4x4xf32, #tpu.memory_space<vmem>>, vector<1x1x4x4xf32>
    %48 = vector.shape_cast %47 : vector<1x1x4x4xf32> to vector<4x4xf32>
    %cst_47 = arith.constant dense<0.000000e+00> : vector<4x256xf32>
    %49 = tpu.matmul %48, %46, %cst_47 {dimension_numbers = #tpu.dot_dimension_numbers<[1], [0], [0], [1], [0, 0, 1, 1], [], []>} : vector<4x4xf32>, vector<4x256xf32>, vector<4x256xf32> -> vector<4x256xf32>
    %50 = arith.addf %41, %49 : vector<4x256xf32>
    %c0_48 = arith.constant 0 : index
    %c129 = arith.constant 129 : index
    %51 = vector.load %arg5[%c0_48, %c129] : memref<4x512xf32, #tpu.memory_space<vmem>>, vector<4x256xf32>
    %c5 = arith.constant 5 : index
    %c0_49 = arith.constant 0 : index
    %c0_50 = arith.constant 0 : index
    %52 = vector.load %arg3[%c5, %c0_49, %c0_50] : memref<18x1x256xf32, #tpu.memory_space<vmem>>, vector<1x1x256xf32>
    %53 = vector.shape_cast %52 : vector<1x1x256xf32> to vector<1x256xf32>
    %54 = vector.broadcast %53 : vector<1x256xf32> to vector<4x256xf32>
    %55 = arith.mulf %51, %54 : vector<4x256xf32>
    %c0_51 = arith.constant 0 : index
    %c5_52 = arith.constant 5 : index
    %c0_53 = arith.constant 0 : index
    %c0_54 = arith.constant 0 : index
    %56 = vector.load %arg2[%c0_51, %c5_52, %c0_53, %c0_54] : memref<2x9x4x4xf32, #tpu.memory_space<vmem>>, vector<1x1x4x4xf32>
    %57 = vector.shape_cast %56 : vector<1x1x4x4xf32> to vector<4x4xf32>
    %cst_55 = arith.constant dense<0.000000e+00> : vector<4x256xf32>
    %58 = tpu.matmul %57, %55, %cst_55 {dimension_numbers = #tpu.dot_dimension_numbers<[1], [0], [0], [1], [0, 0, 1, 1], [], []>} : vector<4x4xf32>, vector<4x256xf32>, vector<4x256xf32> -> vector<4x256xf32>
    %59 = arith.addf %50, %58 : vector<4x256xf32>
    %c0_56 = arith.constant 0 : index
    %c143 = arith.constant 143 : index
    %60 = vector.load %arg5[%c0_56, %c143] : memref<4x512xf32, #tpu.memory_space<vmem>>, vector<4x256xf32>
    %c6 = arith.constant 6 : index
    %c0_57 = arith.constant 0 : index
    %c0_58 = arith.constant 0 : index
    %61 = vector.load %arg3[%c6, %c0_57, %c0_58] : memref<18x1x256xf32, #tpu.memory_space<vmem>>, vector<1x1x256xf32>
    %62 = vector.shape_cast %61 : vector<1x1x256xf32> to vector<1x256xf32>
    %63 = vector.broadcast %62 : vector<1x256xf32> to vector<4x256xf32>
    %64 = arith.mulf %60, %63 : vector<4x256xf32>
    %c0_59 = arith.constant 0 : index
    %c6_60 = arith.constant 6 : index
    %c0_61 = arith.constant 0 : index
    %c0_62 = arith.constant 0 : index
    %65 = vector.load %arg2[%c0_59, %c6_60, %c0_61, %c0_62] : memref<2x9x4x4xf32, #tpu.memory_space<vmem>>, vector<1x1x4x4xf32>
    %66 = vector.shape_cast %65 : vector<1x1x4x4xf32> to vector<4x4xf32>
    %cst_63 = arith.constant dense<0.000000e+00> : vector<4x256xf32>
    %67 = tpu.matmul %66, %64, %cst_63 {dimension_numbers = #tpu.dot_dimension_numbers<[1], [0], [0], [1], [0, 0, 1, 1], [], []>} : vector<4x4xf32>, vector<4x256xf32>, vector<4x256xf32> -> vector<4x256xf32>
    %68 = arith.addf %59, %67 : vector<4x256xf32>
    %c0_64 = arith.constant 0 : index
    %c144 = arith.constant 144 : index
    %69 = vector.load %arg5[%c0_64, %c144] : memref<4x512xf32, #tpu.memory_space<vmem>>, vector<4x256xf32>
    %c7 = arith.constant 7 : index
    %c0_65 = arith.constant 0 : index
    %c0_66 = arith.constant 0 : index
    %70 = vector.load %arg3[%c7, %c0_65, %c0_66] : memref<18x1x256xf32, #tpu.memory_space<vmem>>, vector<1x1x256xf32>
    %71 = vector.shape_cast %70 : vector<1x1x256xf32> to vector<1x256xf32>
    %72 = vector.broadcast %71 : vector<1x256xf32> to vector<4x256xf32>
    %73 = arith.mulf %69, %72 : vector<4x256xf32>
    %c0_67 = arith.constant 0 : index
    %c7_68 = arith.constant 7 : index
    %c0_69 = arith.constant 0 : index
    %c0_70 = arith.constant 0 : index
    %74 = vector.load %arg2[%c0_67, %c7_68, %c0_69, %c0_70] : memref<2x9x4x4xf32, #tpu.memory_space<vmem>>, vector<1x1x4x4xf32>
    %75 = vector.shape_cast %74 : vector<1x1x4x4xf32> to vector<4x4xf32>
    %cst_71 = arith.constant dense<0.000000e+00> : vector<4x256xf32>
    %76 = tpu.matmul %75, %73, %cst_71 {dimension_numbers = #tpu.dot_dimension_numbers<[1], [0], [0], [1], [0, 0, 1, 1], [], []>} : vector<4x4xf32>, vector<4x256xf32>, vector<4x256xf32> -> vector<4x256xf32>
    %77 = arith.addf %68, %76 : vector<4x256xf32>
    %c0_72 = arith.constant 0 : index
    %c145 = arith.constant 145 : index
    %78 = vector.load %arg5[%c0_72, %c145] : memref<4x512xf32, #tpu.memory_space<vmem>>, vector<4x256xf32>
    %c8 = arith.constant 8 : index
    %c0_73 = arith.constant 0 : index
    %c0_74 = arith.constant 0 : index
    %79 = vector.load %arg3[%c8, %c0_73, %c0_74] : memref<18x1x256xf32, #tpu.memory_space<vmem>>, vector<1x1x256xf32>
    %80 = vector.shape_cast %79 : vector<1x1x256xf32> to vector<1x256xf32>
    %81 = vector.broadcast %80 : vector<1x256xf32> to vector<4x256xf32>
    %82 = arith.mulf %78, %81 : vector<4x256xf32>
    %c0_75 = arith.constant 0 : index
    %c8_76 = arith.constant 8 : index
    %c0_77 = arith.constant 0 : index
    %c0_78 = arith.constant 0 : index
    %83 = vector.load %arg2[%c0_75, %c8_76, %c0_77, %c0_78] : memref<2x9x4x4xf32, #tpu.memory_space<vmem>>, vector<1x1x4x4xf32>
    %84 = vector.shape_cast %83 : vector<1x1x4x4xf32> to vector<4x4xf32>
    %cst_79 = arith.constant dense<0.000000e+00> : vector<4x256xf32>
    %85 = tpu.matmul %84, %82, %cst_79 {dimension_numbers = #tpu.dot_dimension_numbers<[1], [0], [0], [1], [0, 0, 1, 1], [], []>} : vector<4x4xf32>, vector<4x256xf32>, vector<4x256xf32> -> vector<4x256xf32>
    %86 = arith.addf %77, %85 : vector<4x256xf32>
    %c0_80 = arith.constant 0 : index
    %c128_81 = arith.constant 128 : index
    %87 = vector.load %arg5[%c0_80, %c128_81] : memref<4x512xf32, #tpu.memory_space<vmem>>, vector<4x256xf32>
    tpu.vector_store %arg5[%c0_80, %c128_81], %86 {strides = array<i32>} : memref<4x512xf32, #tpu.memory_space<vmem>>, vector<4x256xf32>,
    %cst_82 = arith.constant 0.000000e+00 : f32
    %88 = vector.broadcast %cst_82 : f32 to vector<4x256xf32>
    %c0_83 = arith.constant 0 : index
    %c94 = arith.constant 94 : index
    %89 = vector.load %arg5[%c0_83, %c94] : memref<4x512xf32, #tpu.memory_space<vmem>>, vector<4x256xf32>
    %c9 = arith.constant 9 : index
    %c0_84 = arith.constant 0 : index
    %c0_85 = arith.constant 0 : index
    %90 = vector.load %arg3[%c9, %c0_84, %c0_85] : memref<18x1x256xf32, #tpu.memory_space<vmem>>, vector<1x1x256xf32>
    %91 = vector.shape_cast %90 : vector<1x1x256xf32> to vector<1x256xf32>
    %92 = vector.broadcast %91 : vector<1x256xf32> to vector<4x256xf32>
    %93 = arith.mulf %89, %92 : vector<4x256xf32>
    %c1_86 = arith.constant 1 : index
    %c0_87 = arith.constant 0 : index
    %c0_88 = arith.constant 0 : index
    %c0_89 = arith.constant 0 : index
    %94 = vector.load %arg2[%c1_86, %c0_87, %c0_88, %c0_89] : memref<2x9x4x4xf32, #tpu.memory_space<vmem>>, vector<1x1x4x4xf32>
    %95 = vector.shape_cast %94 : vector<1x1x4x4xf32> to vector<4x4xf32>
    %cst_90 = arith.constant dense<0.000000e+00> : vector<4x256xf32>
    %96 = tpu.matmul %95, %93, %cst_90 {dimension_numbers = #tpu.dot_dimension_numbers<[1], [0], [0], [1], [0, 0, 1, 1], [], []>} : vector<4x4xf32>, vector<4x256xf32>, vector<4x256xf32> -> vector<4x256xf32>
    %97 = arith.addf %88, %96 : vector<4x256xf32>
    %c0_91 = arith.constant 0 : index
    %c96 = arith.constant 96 : index
    %98 = vector.load %arg5[%c0_91, %c96] : memref<4x512xf32, #tpu.memory_space<vmem>>, vector<4x256xf32>
    %c10 = arith.constant 10 : index
    %c0_92 = arith.constant 0 : index
    %c0_93 = arith.constant 0 : index
    %99 = vector.load %arg3[%c10, %c0_92, %c0_93] : memref<18x1x256xf32, #tpu.memory_space<vmem>>, vector<1x1x256xf32>
    %100 = vector.shape_cast %99 : vector<1x1x256xf32> to vector<1x256xf32>
    %101 = vector.broadcast %100 : vector<1x256xf32> to vector<4x256xf32>
    %102 = arith.mulf %98, %101 : vector<4x256xf32>
    %c1_94 = arith.constant 1 : index
    %c1_95 = arith.constant 1 : index
    %c0_96 = arith.constant 0 : index
    %c0_97 = arith.constant 0 : index
    %103 = vector.load %arg2[%c1_94, %c1_95, %c0_96, %c0_97] : memref<2x9x4x4xf32, #tpu.memory_space<vmem>>, vector<1x1x4x4xf32>
    %104 = vector.shape_cast %103 : vector<1x1x4x4xf32> to vector<4x4xf32>
    %cst_98 = arith.constant dense<0.000000e+00> : vector<4x256xf32>
    %105 = tpu.matmul %104, %102, %cst_98 {dimension_numbers = #tpu.dot_dimension_numbers<[1], [0], [0], [1], [0, 0, 1, 1], [], []>} : vector<4x4xf32>, vector<4x256xf32>, vector<4x256xf32> -> vector<4x256xf32>
    %106 = arith.addf %97, %105 : vector<4x256xf32>
    %c0_99 = arith.constant 0 : index
    %c98 = arith.constant 98 : index
    %107 = vector.load %arg5[%c0_99, %c98] : memref<4x512xf32, #tpu.memory_space<vmem>>, vector<4x256xf32>
    %c11 = arith.constant 11 : index
    %c0_100 = arith.constant 0 : index
    %c0_101 = arith.constant 0 : index
    %108 = vector.load %arg3[%c11, %c0_100, %c0_101] : memref<18x1x256xf32, #tpu.memory_space<vmem>>, vector<1x1x256xf32>
    %109 = vector.shape_cast %108 : vector<1x1x256xf32> to vector<1x256xf32>
    %110 = vector.broadcast %109 : vector<1x256xf32> to vector<4x256xf32>
    %111 = arith.mulf %107, %110 : vector<4x256xf32>
    %c1_102 = arith.constant 1 : index
    %c2_103 = arith.constant 2 : index
    %c0_104 = arith.constant 0 : index
    %c0_105 = arith.constant 0 : index
    %112 = vector.load %arg2[%c1_102, %c2_103, %c0_104, %c0_105] : memref<2x9x4x4xf32, #tpu.memory_space<vmem>>, vector<1x1x4x4xf32>
    %113 = vector.shape_cast %112 : vector<1x1x4x4xf32> to vector<4x4xf32>
    %cst_106 = arith.constant dense<0.000000e+00> : vector<4x256xf32>
    %114 = tpu.matmul %113, %111, %cst_106 {dimension_numbers = #tpu.dot_dimension_numbers<[1], [0], [0], [1], [0, 0, 1, 1], [], []>} : vector<4x4xf32>, vector<4x256xf32>, vector<4x256xf32> -> vector<4x256xf32>
    %115 = arith.addf %106, %114 : vector<4x256xf32>
    %c0_107 = arith.constant 0 : index
    %c126 = arith.constant 126 : index
    %116 = vector.load %arg5[%c0_107, %c126] : memref<4x512xf32, #tpu.memory_space<vmem>>, vector<4x256xf32>
    %c12 = arith.constant 12 : index
    %c0_108 = arith.constant 0 : index
    %c0_109 = arith.constant 0 : index
    %117 = vector.load %arg3[%c12, %c0_108, %c0_109] : memref<18x1x256xf32, #tpu.memory_space<vmem>>, vector<1x1x256xf32>
    %118 = vector.shape_cast %117 : vector<1x1x256xf32> to vector<1x256xf32>
    %119 = vector.broadcast %118 : vector<1x256xf32> to vector<4x256xf32>
    %120 = arith.mulf %116, %119 : vector<4x256xf32>
    %c1_110 = arith.constant 1 : index
    %c3_111 = arith.constant 3 : index
    %c0_112 = arith.constant 0 : index
    %c0_113 = arith.constant 0 : index
    %121 = vector.load %arg2[%c1_110, %c3_111, %c0_112, %c0_113] : memref<2x9x4x4xf32, #tpu.memory_space<vmem>>, vector<1x1x4x4xf32>
    %122 = vector.shape_cast %121 : vector<1x1x4x4xf32> to vector<4x4xf32>
    %cst_114 = arith.constant dense<0.000000e+00> : vector<4x256xf32>
    %123 = tpu.matmul %122, %120, %cst_114 {dimension_numbers = #tpu.dot_dimension_numbers<[1], [0], [0], [1], [0, 0, 1, 1], [], []>} : vector<4x4xf32>, vector<4x256xf32>, vector<4x256xf32> -> vector<4x256xf32>
    %124 = arith.addf %115, %123 : vector<4x256xf32>
    %c0_115 = arith.constant 0 : index
    %c128_116 = arith.constant 128 : index
    %125 = vector.load %arg5[%c0_115, %c128_116] : memref<4x512xf32, #tpu.memory_space<vmem>>, vector<4x256xf32>
    %c13 = arith.constant 13 : index
    %c0_117 = arith.constant 0 : index
    %c0_118 = arith.constant 0 : index
    %126 = vector.load %arg3[%c13, %c0_117, %c0_118] : memref<18x1x256xf32, #tpu.memory_space<vmem>>, vector<1x1x256xf32>
    %127 = vector.shape_cast %126 : vector<1x1x256xf32> to vector<1x256xf32>
    %128 = vector.broadcast %127 : vector<1x256xf32> to vector<4x256xf32>
    %129 = arith.mulf %125, %128 : vector<4x256xf32>
    %c1_119 = arith.constant 1 : index
    %c4_120 = arith.constant 4 : index
    %c0_121 = arith.constant 0 : index
    %c0_122 = arith.constant 0 : index
    %130 = vector.load %arg2[%c1_119, %c4_120, %c0_121, %c0_122] : memref<2x9x4x4xf32, #tpu.memory_space<vmem>>, vector<1x1x4x4xf32>
    %131 = vector.shape_cast %130 : vector<1x1x4x4xf32> to vector<4x4xf32>
    %cst_123 = arith.constant dense<0.000000e+00> : vector<4x256xf32>
    %132 = tpu.matmul %131, %129, %cst_123 {dimension_numbers = #tpu.dot_dimension_numbers<[1], [0], [0], [1], [0, 0, 1, 1], [], []>} : vector<4x4xf32>, vector<4x256xf32>, vector<4x256xf32> -> vector<4x256xf32>
    %133 = arith.addf %124, %132 : vector<4x256xf32>
    %c0_124 = arith.constant 0 : index
    %c130 = arith.constant 130 : index
    %134 = vector.load %arg5[%c0_124, %c130] : memref<4x512xf32, #tpu.memory_space<vmem>>, vector<4x256xf32>
    %c14 = arith.constant 14 : index
    %c0_125 = arith.constant 0 : index
    %c0_126 = arith.constant 0 : index
    %135 = vector.load %arg3[%c14, %c0_125, %c0_126] : memref<18x1x256xf32, #tpu.memory_space<vmem>>, vector<1x1x256xf32>
    %136 = vector.shape_cast %135 : vector<1x1x256xf32> to vector<1x256xf32>
    %137 = vector.broadcast %136 : vector<1x256xf32> to vector<4x256xf32>
    %138 = arith.mulf %134, %137 : vector<4x256xf32>
    %c1_127 = arith.constant 1 : index
    %c5_128 = arith.constant 5 : index
    %c0_129 = arith.constant 0 : index
    %c0_130 = arith.constant 0 : index
    %139 = vector.load %arg2[%c1_127, %c5_128, %c0_129, %c0_130] : memref<2x9x4x4xf32, #tpu.memory_space<vmem>>, vector<1x1x4x4xf32>
    %140 = vector.shape_cast %139 : vector<1x1x4x4xf32> to vector<4x4xf32>
    %cst_131 = arith.constant dense<0.000000e+00> : vector<4x256xf32>
    %141 = tpu.matmul %140, %138, %cst_131 {dimension_numbers = #tpu.dot_dimension_numbers<[1], [0], [0], [1], [0, 0, 1, 1], [], []>} : vector<4x4xf32>, vector<4x256xf32>, vector<4x256xf32> -> vector<4x256xf32>
    %142 = arith.addf %133, %141 : vector<4x256xf32>
    %c0_132 = arith.constant 0 : index
    %c158 = arith.constant 158 : index
    %143 = vector.load %arg5[%c0_132, %c158] : memref<4x512xf32, #tpu.memory_space<vmem>>, vector<4x256xf32>
    %c15 = arith.constant 15 : index
    %c0_133 = arith.constant 0 : index
    %c0_134 = arith.constant 0 : index
    %144 = vector.load %arg3[%c15, %c0_133, %c0_134] : memref<18x1x256xf32, #tpu.memory_space<vmem>>, vector<1x1x256xf32>
    %145 = vector.shape_cast %144 : vector<1x1x256xf32> to vector<1x256xf32>
    %146 = vector.broadcast %145 : vector<1x256xf32> to vector<4x256xf32>
    %147 = arith.mulf %143, %146 : vector<4x256xf32>
    %c1_135 = arith.constant 1 : index
    %c6_136 = arith.constant 6 : index
    %c0_137 = arith.constant 0 : index
    %c0_138 = arith.constant 0 : index
    %148 = vector.load %arg2[%c1_135, %c6_136, %c0_137, %c0_138] : memref<2x9x4x4xf32, #tpu.memory_space<vmem>>, vector<1x1x4x4xf32>
    %149 = vector.shape_cast %148 : vector<1x1x4x4xf32> to vector<4x4xf32>
    %cst_139 = arith.constant dense<0.000000e+00> : vector<4x256xf32>
    %150 = tpu.matmul %149, %147, %cst_139 {dimension_numbers = #tpu.dot_dimension_numbers<[1], [0], [0], [1], [0, 0, 1, 1], [], []>} : vector<4x4xf32>, vector<4x256xf32>, vector<4x256xf32> -> vector<4x256xf32>
    %151 = arith.addf %142, %150 : vector<4x256xf32>
    %c0_140 = arith.constant 0 : index
    %c160 = arith.constant 160 : index
    %152 = vector.load %arg5[%c0_140, %c160] : memref<4x512xf32, #tpu.memory_space<vmem>>, vector<4x256xf32>
    %c16 = arith.constant 16 : index
    %c0_141 = arith.constant 0 : index
    %c0_142 = arith.constant 0 : index
    %153 = vector.load %arg3[%c16, %c0_141, %c0_142] : memref<18x1x256xf32, #tpu.memory_space<vmem>>, vector<1x1x256xf32>
    %154 = vector.shape_cast %153 : vector<1x1x256xf32> to vector<1x256xf32>
    %155 = vector.broadcast %154 : vector<1x256xf32> to vector<4x256xf32>
    %156 = arith.mulf %152, %155 : vector<4x256xf32>
    %c1_143 = arith.constant 1 : index
    %c7_144 = arith.constant 7 : index
    %c0_145 = arith.constant 0 : index
    %c0_146 = arith.constant 0 : index
    %157 = vector.load %arg2[%c1_143, %c7_144, %c0_145, %c0_146] : memref<2x9x4x4xf32, #tpu.memory_space<vmem>>, vector<1x1x4x4xf32>
    %158 = vector.shape_cast %157 : vector<1x1x4x4xf32> to vector<4x4xf32>
    %cst_147 = arith.constant dense<0.000000e+00> : vector<4x256xf32>
    %159 = tpu.matmul %158, %156, %cst_147 {dimension_numbers = #tpu.dot_dimension_numbers<[1], [0], [0], [1], [0, 0, 1, 1], [], []>} : vector<4x4xf32>, vector<4x256xf32>, vector<4x256xf32> -> vector<4x256xf32>
    %160 = arith.addf %151, %159 : vector<4x256xf32>
    %c0_148 = arith.constant 0 : index
    %c162 = arith.constant 162 : index
    %161 = vector.load %arg5[%c0_148, %c162] : memref<4x512xf32, #tpu.memory_space<vmem>>, vector<4x256xf32>
    %c17 = arith.constant 17 : index
    %c0_149 = arith.constant 0 : index
    %c0_150 = arith.constant 0 : index
    %162 = vector.load %arg3[%c17, %c0_149, %c0_150] : memref<18x1x256xf32, #tpu.memory_space<vmem>>, vector<1x1x256xf32>
    %163 = vector.shape_cast %162 : vector<1x1x256xf32> to vector<1x256xf32>
    %164 = vector.broadcast %163 : vector<1x256xf32> to vector<4x256xf32>
    %165 = arith.mulf %161, %164 : vector<4x256xf32>
    %c1_151 = arith.constant 1 : index
    %c8_152 = arith.constant 8 : index
    %c0_153 = arith.constant 0 : index
    %c0_154 = arith.constant 0 : index
    %166 = vector.load %arg2[%c1_151, %c8_152, %c0_153, %c0_154] : memref<2x9x4x4xf32, #tpu.memory_space<vmem>>, vector<1x1x4x4xf32>
    %167 = vector.shape_cast %166 : vector<1x1x4x4xf32> to vector<4x4xf32>
    %cst_155 = arith.constant dense<0.000000e+00> : vector<4x256xf32>
    %168 = tpu.matmul %167, %165, %cst_155 {dimension_numbers = #tpu.dot_dimension_numbers<[1], [0], [0], [1], [0, 0, 1, 1], [], []>} : vector<4x4xf32>, vector<4x256xf32>, vector<4x256xf32> -> vector<4x256xf32>
    %169 = arith.addf %160, %168 : vector<4x256xf32>
    %c0_156 = arith.constant 0 : index
    %c0_157 = arith.constant 0 : index
    %c0_158 = arith.constant 0 : index
    %170 = vector.load %arg4[%c0_156, %c0_157, %c0_158] : memref<1x4x256xf32, #tpu.memory_space<vmem>>, vector<1x4x256xf32>
    %171 = vector.shape_cast %170 : vector<1x4x256xf32> to vector<4x256xf32>
    %172 = vector.shape_cast %169 : vector<4x256xf32> to vector<1x4x256xf32>
    tpu.vector_store %arg4[%c0_156, %c0_157, %c0_158], %172 {strides = array<i32>} : memref<1x4x256xf32, #tpu.memory_space<vmem>>, vector<1x4x256xf32>,
    return
  }
  func.func @transform_0(%arg0: i32) -> (i32, i32, i32) {
    %c0_i32 = arith.constant 0 : i32
    %c0_i32_0 = arith.constant 0 : i32
    %c0_i32_1 = arith.constant 0 : i32
    return %arg0, %c0_i32, %c0_i32_0 : i32, i32, i32
  }
  func.func @transform_1(%arg0: i32) -> (i32, i32, i32, i32) {
    %c0_i32 = arith.constant 0 : i32
    %c0_i32_0 = arith.constant 0 : i32
    %c0_i32_1 = arith.constant 0 : i32
    %c0_i32_2 = arith.constant 0 : i32
    %c0_i32_3 = arith.constant 0 : i32
    return %c0_i32, %c0_i32_0, %c0_i32_1, %c0_i32_2 : i32, i32, i32, i32
  }
  func.func @transform_2(%arg0: i32) -> (i32, i32, i32) {
    %c0_i32 = arith.constant 0 : i32
    %c0_i32_0 = arith.constant 0 : i32
    %c0_i32_1 = arith.constant 0 : i32
    %c0_i32_2 = arith.constant 0 : i32
    return %c0_i32, %c0_i32_0, %c0_i32_1 : i32, i32, i32
  }
  func.func @transform_3(%arg0: i32) -> (i32, i32, i32) {
    %c0_i32 = arith.constant 0 : i32
    %c0_i32_0 = arith.constant 0 : i32
    %c0_i32_1 = arith.constant 0 : i32
    return %arg0, %c0_i32, %c0_i32_0 : i32, i32, i32
  }
}

</mosaic_0001>

<llo_original>
// kernel: tpu_custom_call.1
$region0: #{tpu_custom_call.1}
  #allocation0 [shape = 'u32[]', space=smem, size = 0x4, offset = 0x4, fixed_abs, tag = 'smem constant byte address 0x4 - core index']
  #allocation1 [shape = 'u32[72,128]{1,0:T(1,128)}', space=vmem, size = 0x9000, scoped, tag = 'internal scratch']
  #allocation2 [shape = 'f32[4,512]{1,0:T(4,128)}', space=vmem, size = 0x2000, scoped, tag = 'scratch operand']
  %s0 = inlined_call_operand.vmem [shape: f32[2,4,256], index: 0, kind: input, shape index: {}]
  %s1 = inlined_call_operand.vmem [shape: f32[2,9,4,4], index: 1, kind: input, shape index: {}]
  %s2 = inlined_call_operand.vmem [shape: f32[18,1,256], index: 2, kind: input, shape index: {}]
  %s3 = inlined_call_operand.hbm [shape: f32[2,4,256], index: 3, kind: output, shape index: {}]
  %s4 = sld [smem:[#allocation0]]
  $region45: #{tpu_custom_call.1} parent=0
    _
  %s6 = ssub.s32 1, %s4
  %s7 = scalar_select 0, %s6, %s4
  $region1: #{tpu_custom_call.1} parent=0
    #allocation3 [shape = 'u8[8192]{0}', space=vmem, size = 0x2000, scoped, tag = 'output window, operand 0']
    #allocation4 [shape = 's32[2]{0}', space=sflag, size = 0x8, scoped, tag = 'scoped memory for tpu_custom_call.1']
    %8 = vsyncpa [#allocation4], 0
    %s9 = scalar_lea.sflag [#allocation4], 1
    %10 = vsyncpa %s9, 0
    loop: start=0, step=1, limit=4
    $region2: #{tpu_custom_call.1} parent=1 // loop_pre_header
      _
    $region3: #{tpu_custom_call.1} parent=1 // loop_header
      %s12 = sphi 0, %s16
      %p13 = scmp.ge.s32.totalorder %s12, 4
      %s22 = sphi 0, %s24
      %s25 = sphi 0, %s22
      %s26 = sphi 0, %s25
      %s42 = sphi 0, %s26
      %s46 = sphi 0, %s46
      %s48 = sphi 0, %s46
      %s49 = sphi 0, %s48
      %s63 = sphi 0, %s49
      %s67 = sphi 0, %s67
      %s69 = sphi 0, %s67
      %s70 = sphi 0, %s69
      %s84 = sphi 0, %s70
      %s90 = sphi 0, %s92
      %s93 = sphi 0, %s90
      %s94 = sphi 0, %s93
      %s110 = sphi 0, %s94
    $region4: #{tpu_custom_call.1} parent=1 // loop_header_branch
      %15 = sbr.rel (%p13) target = $region8
    $region5: #{tpu_custom_call.1} parent=1 // loop_body
      %s17 = ssub.s32 %s12, 1
      %s18 = ssub.s32 %s12, 2
      %s19 = sadd.s32 %s12, 1
      %s20 = ssub.s32 %s12, %s19
      %p21 = scmp.eq.s32.totalorder %s20, 0
      %s23 = sadd.s32 %s22, 1
      %s24 = scalar_select %p21, %s22, %s23
      %p27 = pneg %p21
      %p28 = scmp.eq.s32.totalorder %s12, 1
      %p29 = por %p27, %p28
      %p30 = scmp.ne.s32.totalorder %s22, %s25
      %p31 = scmp.eq.s32.totalorder %s12, 0
      %p32 = por %p30, %p31
      %p33 = scmp.ne.s32.totalorder %s22, %s25
      %p34 = scmp.eq.s32.totalorder %s17, 1
      %p35 = por %p33, %p34
      %p36 = scmp.ne.s32.totalorder %s25, %s26
      %p37 = scmp.eq.s32.totalorder %s17, 0
      %p38 = por %p36, %p37
      %p39 = scmp.ne.s32.totalorder %s25, %s26
      %p40 = scmp.eq.s32.totalorder %s18, 1
      %p41 = por %p39, %p40
      %p43 = scmp.ne.s32.totalorder %s26, %s42
      %p44 = scmp.eq.s32.totalorder %s18, 0
      %p45 = por %p43, %p44
      %s47 = sadd.s32 %s46, 1
      %p50 = scmp.eq.s32.totalorder %s12, 1
      %p51 = scmp.ne.s32.totalorder %s46, %s48
      %p52 = scmp.eq.s32.totalorder %s12, 0
      %p53 = por %p51, %p52
      %p54 = scmp.ne.s32.totalorder %s46, %s48
      %p55 = scmp.eq.s32.totalorder %s17, 1
      %p56 = por %p54, %p55
      %p57 = scmp.ne.s32.totalorder %s48, %s49
      %p58 = scmp.eq.s32.totalorder %s17, 0
      %p59 = por %p57, %p58
      %p60 = scmp.ne.s32.totalorder %s48, %s49
      %p61 = scmp.eq.s32.totalorder %s18, 1
      %p62 = por %p60, %p61
      %p64 = scmp.ne.s32.totalorder %s49, %s63
      %p65 = scmp.eq.s32.totalorder %s18, 0
      %p66 = por %p64, %p65
      %s68 = sadd.s32 %s67, 1
      %p71 = scmp.eq.s32.totalorder %s12, 1
      %p72 = scmp.ne.s32.totalorder %s67, %s69
      %p73 = scmp.eq.s32.totalorder %s12, 0
      %p74 = por %p72, %p73
      %p75 = scmp.ne.s32.totalorder %s67, %s69
      %p76 = scmp.eq.s32.totalorder %s17, 1
      %p77 = por %p75, %p76
      %p78 = scmp.ne.s32.totalorder %s69, %s70
      %p79 = scmp.eq.s32.totalorder %s17, 0
      %p80 = por %p78, %p79
      %p81 = scmp.ne.s32.totalorder %s69, %s70
      %p82 = scmp.eq.s32.totalorder %s18, 1
      %p83 = por %p81, %p82
      %p85 = scmp.ne.s32.totalorder %s70, %s84
      %p86 = scmp.eq.s32.totalorder %s18, 0
      %p87 = por %p85, %p86
      %s88 = ssub.s32 %s12, %s19
      %p89 = scmp.eq.s32.totalorder %s88, 0
      %s91 = sadd.s32 %s90, 1
      %s92 = scalar_select %p89, %s90, %s91
      %p95 = pneg %p89
      %p96 = scmp.eq.s32.totalorder %s12, 1
      %p97 = por %p95, %p96
      %p98 = scmp.ne.s32.totalorder %s90, %s93
      %p99 = scmp.eq.s32.totalorder %s12, 0
      %p100 = por %p98, %p99
      %p101 = scmp.ne.s32.totalorder %s90, %s93
      %p102 = scmp.eq.s32.totalorder %s17, 1
      %p103 = por %p101, %p102
      %p104 = scmp.ne.s32.totalorder %s93, %s94
      %p105 = scmp.eq.s32.totalorder %s17, 0
      %p106 = por %p104, %p105
      %p107 = scmp.ne.s32.totalorder %s93, %s94
      %p108 = scmp.eq.s32.totalorder %s18, 1
      %p109 = por %p107, %p108
      %p111 = scmp.ne.s32.totalorder %s94, %s110
      %p112 = scmp.eq.s32.totalorder %s18, 0
      %p113 = por %p111, %p112
      %p114 = scmp.le.s32.totalorder 1, %s12
      %p115 = scmp.lt.s32.totalorder %s12, 3
      %p116 = pnand %p114, %p115
      %p117 = pneg %p116
      // Predicated region
      $region9: #{tpu_custom_call.1} parent=5 // pred_check
        _
      $region10: #{tpu_custom_call.1} parent=5 // pred_check_branch
        %119 = sbr.rel (%p116) target = $region12
      $region11: #{tpu_custom_call.1} parent=5 // pred_region
        %s120 = ssub.s32 %s12, 1
        // Predicated region
        $region13: #{tpu_custom_call.1} parent=11 // pred_check
          %p121 = pneg %p59
        $region14: #{tpu_custom_call.1} parent=11 // pred_check_branch
          %123 = sbr.rel (%p121) target = $region16
        $region15: #{tpu_custom_call.1} parent=11 // pred_region
          _
        $region16: #{tpu_custom_call.1} parent=11 // pred_fallthru
          _
        // Predicated region
        $region17: #{tpu_custom_call.1} parent=11 // pred_check
          %p124 = pneg %p80
        $region18: #{tpu_custom_call.1} parent=11 // pred_check_branch
          %126 = sbr.rel (%p124) target = $region20
        $region19: #{tpu_custom_call.1} parent=11 // pred_region
          _
        $region20: #{tpu_custom_call.1} parent=11 // pred_fallthru
          _
      $region12: #{tpu_custom_call.1} parent=5 // pred_fallthru
        _
      %p127 = scmp.lt.s32.totalorder %s12, 2
      // Predicated region
      $region21: #{tpu_custom_call.1} parent=5 // pred_check
        %p128 = pneg %p127
      $region22: #{tpu_custom_call.1} parent=5 // pred_check_branch
        %130 = sbr.rel (%p128) target = $region24
      $region23: #{tpu_custom_call.1} parent=5 // pred_region
        // Predicated region
        $region25: #{tpu_custom_call.1} parent=23 // pred_check
          %p131 = pneg %p32
        $region26: #{tpu_custom_call.1} parent=23 // pred_check_branch
          %133 = sbr.rel (%p131) target = $region28
        $region27: #{tpu_custom_call.1} parent=23 // pred_region
          %p134 = scmp.lt.s32.totalorder %s12, 1
          %s135 = scalar_select %p134, %s12, 1
          %s136 = smul.addr %s135, 2
          %s137 = smul.addr %s136, 4
          %s138 = scalar_lea.vmem %s0, %s137
        $region28: #{tpu_custom_call.1} parent=23 // pred_fallthru
          _
      $region24: #{tpu_custom_call.1} parent=5 // pred_fallthru
        _
      %p139 = scmp.le.s32.totalorder 1, %s12
      %p140 = scmp.lt.s32.totalorder %s12, 3
      %p141 = pnand %p139, %p140
      %p142 = pneg %p141
      // Predicated region
      $region29: #{tpu_custom_call.1} parent=5 // pred_check
        _
      $region30: #{tpu_custom_call.1} parent=5 // pred_check_branch
        %144 = sbr.rel (%p141) target = $region32
      $region31: #{tpu_custom_call.1} parent=5 // pred_region
        %s145 = ssub.s32 %s12, 1
        %p146 = scmp.lt.s32.totalorder %s17, 1
        %s147 = scalar_select %p146, %s17, 1
        %s148 = smul.addr %s147, 2
        %s149 = smul.addr %s148, 4
        %s150 = scalar_lea.vmem %s0, %s149
        %p151 = pneg %p38
        %p152 = pneg %p35
        %p153 = pneg %p59
        %p154 = pneg %p56
        %p155 = pneg %p80
        %p156 = pneg %p77
        %p157 = pneg %p106
        %p158 = pneg %p103
        %s159 = sand.u32 %s93, 1
        %s160 = scalar_lea.sflag [#allocation4], %s159
        %s161 = sand.u32 %s93, 1
        %s162 = smul.addr %s161, 8
        %s163 = scalar_lea.vmem [#allocation3], %s162
        %p164 = scmp.lt.s32.totalorder %s17, 1
        %s165 = scalar_select %p164, %s17, 1
        %s166 = smul.addr %s165, 2
        %s167 = smul.addr %s166, 4
        %s168 = scalar_lea.vmem %s0, %s167
        %169 = vst [vmem:[#allocation2] sm:$0xff] 0.0
        %170 = vst [vmem:[#allocation2 + $0x8] sm:$0xff] 0.0
        %v171 = vld [vmem:[%s168] sm:$0xff]
        %172 = vst [vmem:[#allocation2 + $0x4] sm:$0xff] %v171
        %v173 = vld [vmem:[#allocation2] sm:$0xff]
        %v174 = vld [vmem:[#allocation2 + $0x8] sm:$0xf]
        %v175 = vld [vmem:[%s2] sm:$0x3]
        %v177 = vperm.slane %v175, 0
        %v178 = vperm.slane %v175, 1
        %v179 = vrot.slane %v178, 4
        %vm180 = vcmask 1043456
        %v181 = vsel %vm180, %v177, %v179
        %182 = vrot.lane.b32.xlu0 %v181, 111
        %v183 = vpop.permute.xlu0 %182
        %v184 = vrot.slane %v183, 4
        %vm185 = vcmask 908288
        %v186 = vsel %vm185, %v184, %v183
        %v189 = vmul.f32 %v173, %v186
        %v190 = vmul.f32 %v174, %v184
        %v191 = vld [vmem:[%s1] sm:$0xf]
        %s192 = scalar_lea.vmem %s2, 2
        %v193 = vld [vmem:[%s192] sm:$0x3]
        %v195 = vperm.slane %v193, 0
        %v196 = vperm.slane %v193, 1
        %v197 = vrot.slane %v196, 4
        %v198 = vsel %vm180, %v195, %v197
        %199 = vrot.lane.b32.xlu0 %v198, 112
        %v200 = vpop.permute.xlu0 %199
        %v201 = vrot.slane %v200, 4
        %vm202 = vcmask 916480
        %v203 = vsel %vm202, %v201, %v200
        %v206 = vmul.f32 %v173, %v203
        %v207 = vmul.f32 %v174, %v201
        %s208 = scalar_lea.vmem %s1, 4
        %v209 = vld [vmem:[%s208] sm:$0xf]
        %212 = vst [vmem:[#allocation1] ss:$2 sm:$0xff] %v206
        %s213 = scalar_lea.vmem [#allocation1], 16
        %214 = vst [vmem:[%s213] ss:$2 sm:$0xff] %v207
        %v215 = vld.sshfl [vmem:[#allocation1] sm:$0xff pattern:$0x75316420]
        %v216 = vld.sshfl [vmem:[#allocation1 + $0x8] sm:$0xff pattern:$0x75316420]
        %v217 = vld.sshfl [vmem:[#allocation1 + $0x10] sm:$0xff pattern:$0x75316420]
        %218 = vrot.lane.b32.xlu0 %v215, 16
        %v219 = vpop.permute.xlu0 %218
        %220 = vrot.lane.b32.xlu0 %v216, 16
        %v221 = vpop.permute.xlu0 %220
        %222 = vrot.lane.b32.xlu0 %v217, 16
        %v223 = vpop.permute.xlu0 %222
        %vm224 = vcmask 130048
        %v225 = vsel %vm224, %v219, %v221
        %v226 = vsel %vm224, %v221, %v223
        %vm227 = vcmask 31744
        %v229 = vsel %vm227, %v209, 0
        %v231 = vsel %vm180, %v225, 0
        %v233 = vsel %vm180, %v226, 0
        %235 = vmatpush.msra.mxu0 0.0
        %236 = vmatpush.msra.mxu0 0.0
        %237 = vmatpush.msra.mxu0 0.0
        %238 = vmatpush.msra.mxu0 0.0
        %239 = vmatpush.msra.mxu0 0.0
        %240 = vmatpush.msra.mxu0 0.0
        %241 = vmatpush.msra.mxu0 0.0
        %242 = vmatpush.msra.mxu0 0.0
        %243 = vmatpush.msra.mxu0 0.0
        %244 = vmatpush.msra.mxu0 0.0
        %245 = vmatpush.msra.mxu0 0.0
        %246 = vmatpush.msra.mxu0 0.0
        %247 = vmatpush.msra.mxu0 0.0
        %248 = vmatpush.msra.mxu0 0.0
        %249 = vmatpush.msra.mxu0 0.0
        %250 = vmatpush.msra.mxu0 %v231
        %251 = vmatmul.f32.gmra.mxu0 %v229
        %v252 = vpop.f32.mrf.mxu0
        %v253 = vadd.f32 0.0, %v252
        %254 = vdwg.mxu0
        %255 = vmatpush.msra.mxu0 0.0
        %256 = vmatpush.msra.mxu0 0.0
        %257 = vmatpush.msra.mxu0 0.0
        %258 = vmatpush.msra.mxu0 0.0
        %259 = vmatpush.msra.mxu0 0.0
        %260 = vmatpush.msra.mxu0 0.0
        %261 = vmatpush.msra.mxu0 0.0
        %262 = vmatpush.msra.mxu0 0.0
        %263 = vmatpush.msra.mxu0 0.0
        %264 = vmatpush.msra.mxu0 0.0
        %265 = vmatpush.msra.mxu0 0.0
        %266 = vmatpush.msra.mxu0 0.0
        %267 = vmatpush.msra.mxu0 0.0
        %268 = vmatpush.msra.mxu0 0.0
        %269 = vmatpush.msra.mxu0 0.0
        %270 = vmatpush.msra.mxu0 %v233
        %271 = vmatmul.f32.gmra.mxu0 %v229
        %v272 = vpop.f32.mrf.mxu0
        %v273 = vadd.f32 0.0, %v272
        %274 = vdwg.mxu0
        %277 = vst [vmem:[#allocation1] ss:$2 sm:$0xff] %v189
        %s278 = scalar_lea.vmem [#allocation1], 16
        %279 = vst [vmem:[%s278] ss:$2 sm:$0xff] %v190
        %v280 = vld.sshfl [vmem:[#allocation1] sm:$0xff pattern:$0x75316420]
        %v281 = vld.sshfl [vmem:[#allocation1 + $0x8] sm:$0xff pattern:$0x75316420]
        %v282 = vld.sshfl [vmem:[#allocation1 + $0x10] sm:$0xff pattern:$0x75316420]
        %283 = vrot.lane.b32.xlu0 %v280, 17
        %v284 = vpop.permute.xlu0 %283
        %285 = vrot.lane.b32.xlu0 %v281, 17
        %v286 = vpop.permute.xlu0 %285
        %287 = vrot.lane.b32.xlu0 %v282, 17
        %v288 = vpop.permute.xlu0 %287
        %vm289 = vcmask 138240
        %v290 = vsel %vm289, %v284, %v286
        %v291 = vsel %vm289, %v286, %v288
        %v293 = vsel %vm227, %v191, 0
        %v295 = vsel %vm180, %v290, 0
        %v297 = vsel %vm180, %v291, 0
        %299 = vmatpush.msra.mxu0 0.0
        %300 = vmatpush.msra.mxu0 0.0
        %301 = vmatpush.msra.mxu0 0.0
        %302 = vmatpush.msra.mxu0 0.0
        %303 = vmatpush.msra.mxu0 0.0
        %304 = vmatpush.msra.mxu0 0.0
        %305 = vmatpush.msra.mxu0 0.0
        %306 = vmatpush.msra.mxu0 0.0
        %307 = vmatpush.msra.mxu0 0.0
        %308 = vmatpush.msra.mxu0 0.0
        %309 = vmatpush.msra.mxu0 0.0
        %310 = vmatpush.msra.mxu0 0.0
        %311 = vmatpush.msra.mxu0 0.0
        %312 = vmatpush.msra.mxu0 0.0
        %313 = vmatpush.msra.mxu0 0.0
        %314 = vmatpush.msra.mxu0 %v295
        %315 = vmatmul.f32.gmra.mxu0 %v293
        %v316 = vpop.f32.mrf.mxu0
        %v317 = vadd.f32 %v253, %v316
        %318 = vdwg.mxu0
        %319 = vmatpush.msra.mxu0 0.0
        %320 = vmatpush.msra.mxu0 0.0
        %321 = vmatpush.msra.mxu0 0.0
        %322 = vmatpush.msra.mxu0 0.0
        %323 = vmatpush.msra.mxu0 0.0
        %324 = vmatpush.msra.mxu0 0.0
        %325 = vmatpush.msra.mxu0 0.0
        %326 = vmatpush.msra.mxu0 0.0
        %327 = vmatpush.msra.mxu0 0.0
        %328 = vmatpush.msra.mxu0 0.0
        %329 = vmatpush.msra.mxu0 0.0
        %330 = vmatpush.msra.mxu0 0.0
        %331 = vmatpush.msra.mxu0 0.0
        %332 = vmatpush.msra.mxu0 0.0
        %333 = vmatpush.msra.mxu0 0.0
        %334 = vmatpush.msra.mxu0 %v297
        %335 = vmatmul.f32.gmra.mxu0 %v293
        %v336 = vpop.f32.mrf.mxu0
        %v337 = vadd.f32 %v273, %v336
        %338 = vdwg.mxu0
        %v339 = vld [vmem:[#allocation2] sm:$0xff]
        %v340 = vld [vmem:[#allocation2 + $0x8] sm:$0xf]
        %s341 = scalar_lea.vmem %s2, 4
        %v342 = vld [vmem:[%s341] sm:$0x3]
        %v344 = vperm.slane %v342, 0
        %v345 = vperm.slane %v342, 1
        %v346 = vrot.slane %v345, 4
        %v347 = vsel %vm180, %v344, %v346
        %348 = vrot.lane.b32.xlu0 %v347, 113
        %v349 = vpop.permute.xlu0 %348
        %v350 = vrot.slane %v349, 4
        %vm351 = vcmask 924672
        %v352 = vsel %vm351, %v350, %v349
        %v355 = vmul.f32 %v339, %v352
        %v356 = vmul.f32 %v340, %v350
        %s357 = scalar_lea.vmem %s1, 8
        %v358 = vld [vmem:[%s357] sm:$0xf]
        %361 = vst [vmem:[#allocation1] ss:$2 sm:$0xff] %v355
        %s362 = scalar_lea.vmem [#allocation1], 16
        %363 = vst [vmem:[%s362] ss:$2 sm:$0xff] %v356
        %v364 = vld.sshfl [vmem:[#allocation1] sm:$0xff pattern:$0x75316420]
        %v365 = vld.sshfl [vmem:[#allocation1 + $0x8] sm:$0xff pattern:$0x75316420]
        %v366 = vld.sshfl [vmem:[#allocation1 + $0x10] sm:$0xff pattern:$0x75316420]
        %367 = vrot.lane.b32.xlu0 %v364, 15
        %v368 = vpop.permute.xlu0 %367
        %369 = vrot.lane.b32.xlu0 %v365, 15
        %v370 = vpop.permute.xlu0 %369
        %371 = vrot.lane.b32.xlu0 %v366, 15
        %v372 = vpop.permute.xlu0 %371
        %vm373 = vcmask 121856
        %v374 = vsel %vm373, %v368, %v370
        %v375 = vsel %vm373, %v370, %v372
        %v377 = vsel %vm227, %v358, 0
        %v379 = vsel %vm180, %v374, 0
        %v381 = vsel %vm180, %v375, 0
        %383 = vmatpush.msra.mxu0 0.0
        %384 = vmatpush.msra.mxu0 0.0
        %385 = vmatpush.msra.mxu0 0.0
        %386 = vmatpush.msra.mxu0 0.0
        %387 = vmatpush.msra.mxu0 0.0
        %388 = vmatpush.msra.mxu0 0.0
        %389 = vmatpush.msra.mxu0 0.0
        %390 = vmatpush.msra.mxu0 0.0
        %391 = vmatpush.msra.mxu0 0.0
        %392 = vmatpush.msra.mxu0 0.0
        %393 = vmatpush.msra.mxu0 0.0
        %394 = vmatpush.msra.mxu0 0.0
        %395 = vmatpush.msra.mxu0 0.0
        %396 = vmatpush.msra.mxu0 0.0
        %397 = vmatpush.msra.mxu0 0.0
        %398 = vmatpush.msra.mxu0 %v379
        %399 = vmatmul.f32.gmra.mxu0 %v377
        %v400 = vpop.f32.mrf.mxu0
        %v401 = vadd.f32 0.0, %v400
        %402 = vdwg.mxu0
        %403 = vmatpush.msra.mxu0 0.0
        %404 = vmatpush.msra.mxu0 0.0
        %405 = vmatpush.msra.mxu0 0.0
        %406 = vmatpush.msra.mxu0 0.0
        %407 = vmatpush.msra.mxu0 0.0
        %408 = vmatpush.msra.mxu0 0.0
        %409 = vmatpush.msra.mxu0 0.0
        %410 = vmatpush.msra.mxu0 0.0
        %411 = vmatpush.msra.mxu0 0.0
        %412 = vmatpush.msra.mxu0 0.0
        %413 = vmatpush.msra.mxu0 0.0
        %414 = vmatpush.msra.mxu0 0.0
        %415 = vmatpush.msra.mxu0 0.0
        %416 = vmatpush.msra.mxu0 0.0
        %417 = vmatpush.msra.mxu0 0.0
        %418 = vmatpush.msra.mxu0 %v381
        %419 = vmatmul.f32.gmra.mxu0 %v377
        %v420 = vpop.f32.mrf.mxu0
        %v421 = vadd.f32 0.0, %v420
        %422 = vdwg.mxu0
        %v423 = vadd.f32 %v317, %v401
        %v424 = vadd.f32 %v337, %v421
        %v425 = vld [vmem:[#allocation2] sm:$0xff]
        %v426 = vld [vmem:[#allocation2 + $0x8] sm:$0xf]
        %s427 = scalar_lea.vmem %s2, 6
        %v428 = vld [vmem:[%s427] sm:$0x3]
        %v430 = vperm.slane %v428, 0
        %v431 = vperm.slane %v428, 1
        %v432 = vrot.slane %v431, 4
        %v433 = vsel %vm180, %v430, %v432
        %434 = vrot.lane.b32.xlu0 %v433, 127
        %v435 = vpop.permute.xlu0 %434
        %v436 = vrot.slane %v435, 4
        %vm437 = vcmask 1039360
        %v438 = vsel %vm437, %v436, %v435
        %v441 = vmul.f32 %v425, %v438
        %v442 = vmul.f32 %v426, %v436
        %s443 = scalar_lea.vmem %s1, 12
        %v444 = vld [vmem:[%s443] sm:$0xf]
        %447 = vst [vmem:[#allocation1] ss:$2 sm:$0xff] %v441
        %s448 = scalar_lea.vmem [#allocation1], 16
        %449 = vst [vmem:[%s448] ss:$2 sm:$0xff] %v442
        %v450 = vld.sshfl [vmem:[#allocation1] sm:$0xff pattern:$0x75316420]
        %v451 = vld.sshfl [vmem:[#allocation1 + $0x8] sm:$0xff pattern:$0x75316420]
        %v452 = vld.sshfl [vmem:[#allocation1 + $0x10] sm:$0xff pattern:$0x75316420]
        %453 = vrot.lane.b32.xlu0 %v450, 1
        %v454 = vpop.permute.xlu0 %453
        %455 = vrot.lane.b32.xlu0 %v451, 1
        %v456 = vpop.permute.xlu0 %455
        %457 = vrot.lane.b32.xlu0 %v452, 1
        %v458 = vpop.permute.xlu0 %457
        %vm459 = vcmask 7168
        %v460 = vsel %vm459, %v454, %v456
        %v461 = vsel %vm459, %v456, %v458
        %v463 = vsel %vm227, %v444, 0
        %v465 = vsel %vm180, %v460, 0
        %v467 = vsel %vm180, %v461, 0
        %469 = vmatpush.msra.mxu0 0.0
        %470 = vmatpush.msra.mxu0 0.0
        %471 = vmatpush.msra.mxu0 0.0
        %472 = vmatpush.msra.mxu0 0.0
        %473 = vmatpush.msra.mxu0 0.0
        %474 = vmatpush.msra.mxu0 0.0
        %475 = vmatpush.msra.mxu0 0.0
        %476 = vmatpush.msra.mxu0 0.0
        %477 = vmatpush.msra.mxu0 0.0
        %478 = vmatpush.msra.mxu0 0.0
        %479 = vmatpush.msra.mxu0 0.0
        %480 = vmatpush.msra.mxu0 0.0
        %481 = vmatpush.msra.mxu0 0.0
        %482 = vmatpush.msra.mxu0 0.0
        %483 = vmatpush.msra.mxu0 0.0
        %484 = vmatpush.msra.mxu0 %v465
        %485 = vmatmul.f32.gmra.mxu0 %v463
        %v486 = vpop.f32.mrf.mxu0
        %v487 = vadd.f32 0.0, %v486
        %488 = vdwg.mxu0
        %489 = vmatpush.msra.mxu0 0.0
        %490 = vmatpush.msra.mxu0 0.0
        %491 = vmatpush.msra.mxu0 0.0
        %492 = vmatpush.msra.mxu0 0.0
        %493 = vmatpush.msra.mxu0 0.0
        %494 = vmatpush.msra.mxu0 0.0
        %495 = vmatpush.msra.mxu0 0.0
        %496 = vmatpush.msra.mxu0 0.0
        %497 = vmatpush.msra.mxu0 0.0
        %498 = vmatpush.msra.mxu0 0.0
        %499 = vmatpush.msra.mxu0 0.0
        %500 = vmatpush.msra.mxu0 0.0
        %501 = vmatpush.msra.mxu0 0.0
        %502 = vmatpush.msra.mxu0 0.0
        %503 = vmatpush.msra.mxu0 0.0
        %504 = vmatpush.msra.mxu0 %v467
        %505 = vmatmul.f32.gmra.mxu0 %v463
        %v506 = vpop.f32.mrf.mxu0
        %v507 = vadd.f32 0.0, %v506
        %508 = vdwg.mxu0
        %v509 = vadd.f32 %v423, %v487
        %v510 = vadd.f32 %v424, %v507
        %v511 = vld [vmem:[#allocation2 + $0x4] sm:$0xff]
        %s512 = scalar_lea.vmem %s2, 8
        %v513 = vld [vmem:[%s512] sm:$0x3]
        %v515 = vperm.slane %v513, 0
        %v516 = vperm.slane %v513, 1
        %v517 = vrot.slane %v516, 4
        %v518 = vsel %vm180, %v515, %v517
        %v520 = vmul.f32 %v511, %v518
        %s521 = scalar_lea.vmem %s1, 16
        %v522 = vld [vmem:[%s521] sm:$0xf]
        %524 = vst [vmem:[#allocation1] ss:$2 sm:$0xff] %v520
        %v525 = vld.sshfl [vmem:[#allocation1] sm:$0xff pattern:$0x75316420]
        %v526 = vld.sshfl [vmem:[#allocation1 + $0x8] sm:$0xff pattern:$0x75316420]
        %v528 = vsel %vm227, %v522, 0
        %v530 = vsel %vm180, %v525, 0
        %v532 = vsel %vm180, %v526, 0
        %534 = vmatpush.msra.mxu0 0.0
        %535 = vmatpush.msra.mxu0 0.0
        %536 = vmatpush.msra.mxu0 0.0
        %537 = vmatpush.msra.mxu0 0.0
        %538 = vmatpush.msra.mxu0 0.0
        %539 = vmatpush.msra.mxu0 0.0
        %540 = vmatpush.msra.mxu0 0.0
        %541 = vmatpush.msra.mxu0 0.0
        %542 = vmatpush.msra.mxu0 0.0
        %543 = vmatpush.msra.mxu0 0.0
        %544 = vmatpush.msra.mxu0 0.0
        %545 = vmatpush.msra.mxu0 0.0
        %546 = vmatpush.msra.mxu0 0.0
        %547 = vmatpush.msra.mxu0 0.0
        %548 = vmatpush.msra.mxu0 0.0
        %549 = vmatpush.msra.mxu0 %v530
        %550 = vmatmul.f32.gmra.mxu0 %v528
        %v551 = vpop.f32.mrf.mxu0
        %v552 = vadd.f32 0.0, %v551
        %553 = vdwg.mxu0
        %554 = vmatpush.msra.mxu0 0.0
        %555 = vmatpush.msra.mxu0 0.0
        %556 = vmatpush.msra.mxu0 0.0
        %557 = vmatpush.msra.mxu0 0.0
        %558 = vmatpush.msra.mxu0 0.0
        %559 = vmatpush.msra.mxu0 0.0
        %560 = vmatpush.msra.mxu0 0.0
        %561 = vmatpush.msra.mxu0 0.0
        %562 = vmatpush.msra.mxu0 0.0
        %563 = vmatpush.msra.mxu0 0.0
        %564 = vmatpush.msra.mxu0 0.0
        %565 = vmatpush.msra.mxu0 0.0
        %566 = vmatpush.msra.mxu0 0.0
        %567 = vmatpush.msra.mxu0 0.0
        %568 = vmatpush.msra.mxu0 0.0
        %569 = vmatpush.msra.mxu0 %v532
        %570 = vmatmul.f32.gmra.mxu0 %v528
        %v571 = vpop.f32.mrf.mxu0
        %v572 = vadd.f32 0.0, %v571
        %573 = vdwg.mxu0
        %v574 = vadd.f32 %v509, %v552
        %v575 = vadd.f32 %v510, %v572
        %v576 = vld [vmem:[#allocation2 + $0x4] sm:$0xff]
        %v577 = vld [vmem:[#allocation2 + $0xc] sm:$0xf]
        %s578 = scalar_lea.vmem %s2, 10
        %v579 = vld [vmem:[%s578] sm:$0x3]
        %v581 = vperm.slane %v579, 0
        %v582 = vperm.slane %v579, 1
        %v583 = vrot.slane %v582, 4
        %v584 = vsel %vm180, %v581, %v583
        %585 = vrot.lane.b32.xlu0 %v584, 1
        %v586 = vpop.permute.xlu0 %585
        %v587 = vrot.slane %v586, 4
        %v588 = vsel %vm459, %v587, %v586
        %v591 = vmul.f32 %v576, %v588
        %v592 = vmul.f32 %v577, %v587
        %s593 = scalar_lea.vmem %s1, 20
        %v594 = vld [vmem:[%s593] sm:$0xf]
        %597 = vst [vmem:[#allocation1] ss:$2 sm:$0xff] %v591
        %s598 = scalar_lea.vmem [#allocation1], 16
        %599 = vst [vmem:[%s598] ss:$2 sm:$0xff] %v592
        %v600 = vld.sshfl [vmem:[#allocation1] sm:$0xff pattern:$0x75316420]
        %v601 = vld.sshfl [vmem:[#allocation1 + $0x8] sm:$0xff pattern:$0x75316420]
        %v602 = vld.sshfl [vmem:[#allocation1 + $0x10] sm:$0xff pattern:$0x75316420]
        %603 = vrot.lane.b32.xlu0 %v600, 127
        %v604 = vpop.permute.xlu0 %603
        %605 = vrot.lane.b32.xlu0 %v601, 127
        %v606 = vpop.permute.xlu0 %605
        %607 = vrot.lane.b32.xlu0 %v602, 127
        %v608 = vpop.permute.xlu0 %607
        %v609 = vsel %vm437, %v604, %v606
        %v610 = vsel %vm437, %v606, %v608
        %v612 = vsel %vm227, %v594, 0
        %v614 = vsel %vm180, %v609, 0
        %v616 = vsel %vm180, %v610, 0
        %618 = vmatpush.msra.mxu0 0.0
        %619 = vmatpush.msra.mxu0 0.0
        %620 = vmatpush.msra.mxu0 0.0
        %621 = vmatpush.msra.mxu0 0.0
        %622 = vmatpush.msra.mxu0 0.0
        %623 = vmatpush.msra.mxu0 0.0
        %624 = vmatpush.msra.mxu0 0.0
        %625 = vmatpush.msra.mxu0 0.0
        %626 = vmatpush.msra.mxu0 0.0
        %627 = vmatpush.msra.mxu0 0.0
        %628 = vmatpush.msra.mxu0 0.0
        %629 = vmatpush.msra.mxu0 0.0
        %630 = vmatpush.msra.mxu0 0.0
        %631 = vmatpush.msra.mxu0 0.0
        %632 = vmatpush.msra.mxu0 0.0
        %633 = vmatpush.msra.mxu0 %v614
        %634 = vmatmul.f32.gmra.mxu0 %v612
        %v635 = vpop.f32.mrf.mxu0
        %v636 = vadd.f32 0.0, %v635
        %637 = vdwg.mxu0
        %638 = vmatpush.msra.mxu0 0.0
        %639 = vmatpush.msra.mxu0 0.0
        %640 = vmatpush.msra.mxu0 0.0
        %641 = vmatpush.msra.mxu0 0.0
        %642 = vmatpush.msra.mxu0 0.0
        %643 = vmatpush.msra.mxu0 0.0
        %644 = vmatpush.msra.mxu0 0.0
        %645 = vmatpush.msra.mxu0 0.0
        %646 = vmatpush.msra.mxu0 0.0
        %647 = vmatpush.msra.mxu0 0.0
        %648 = vmatpush.msra.mxu0 0.0
        %649 = vmatpush.msra.mxu0 0.0
        %650 = vmatpush.msra.mxu0 0.0
        %651 = vmatpush.msra.mxu0 0.0
        %652 = vmatpush.msra.mxu0 0.0
        %653 = vmatpush.msra.mxu0 %v616
        %654 = vmatmul.f32.gmra.mxu0 %v612
        %v655 = vpop.f32.mrf.mxu0
        %v656 = vadd.f32 0.0, %v655
        %657 = vdwg.mxu0
        %v658 = vadd.f32 %v574, %v636
        %v659 = vadd.f32 %v575, %v656
        %v660 = vld [vmem:[#allocation2 + $0x4] sm:$0xff]
        %v661 = vld [vmem:[#allocation2 + $0xc] sm:$0xf]
        %s662 = scalar_lea.vmem %s2, 12
        %v663 = vld [vmem:[%s662] sm:$0x3]
        %v665 = vperm.slane %v663, 0
        %v666 = vperm.slane %v663, 1
        %v667 = vrot.slane %v666, 4
        %v668 = vsel %vm180, %v665, %v667
        %669 = vrot.lane.b32.xlu0 %v668, 15
        %v670 = vpop.permute.xlu0 %669
        %v671 = vrot.slane %v670, 4
        %v672 = vsel %vm373, %v671, %v670
        %v675 = vmul.f32 %v660, %v672
        %v676 = vmul.f32 %v661, %v671
        %s677 = scalar_lea.vmem %s1, 24
        %v678 = vld [vmem:[%s677] sm:$0xf]
        %681 = vst [vmem:[#allocation1] ss:$2 sm:$0xff] %v675
        %s682 = scalar_lea.vmem [#allocation1], 16
        %683 = vst [vmem:[%s682] ss:$2 sm:$0xff] %v676
        %v684 = vld.sshfl [vmem:[#allocation1] sm:$0xff pattern:$0x75316420]
        %v685 = vld.sshfl [vmem:[#allocation1 + $0x8] sm:$0xff pattern:$0x75316420]
        %v686 = vld.sshfl [vmem:[#allocation1 + $0x10] sm:$0xff pattern:$0x75316420]
        %687 = vrot.lane.b32.xlu0 %v684, 113
        %v688 = vpop.permute.xlu0 %687
        %689 = vrot.lane.b32.xlu0 %v685, 113
        %v690 = vpop.permute.xlu0 %689
        %691 = vrot.lane.b32.xlu0 %v686, 113
        %v692 = vpop.permute.xlu0 %691
        %v693 = vsel %vm351, %v688, %v690
        %v694 = vsel %vm351, %v690, %v692
        %v696 = vsel %vm227, %v678, 0
        %v698 = vsel %vm180, %v693, 0
        %v700 = vsel %vm180, %v694, 0
        %702 = vmatpush.msra.mxu0 0.0
        %703 = vmatpush.msra.mxu0 0.0
        %704 = vmatpush.msra.mxu0 0.0
        %705 = vmatpush.msra.mxu0 0.0
        %706 = vmatpush.msra.mxu0 0.0
        %707 = vmatpush.msra.mxu0 0.0
        %708 = vmatpush.msra.mxu0 0.0
        %709 = vmatpush.msra.mxu0 0.0
        %710 = vmatpush.msra.mxu0 0.0
        %711 = vmatpush.msra.mxu0 0.0
        %712 = vmatpush.msra.mxu0 0.0
        %713 = vmatpush.msra.mxu0 0.0
        %714 = vmatpush.msra.mxu0 0.0
        %715 = vmatpush.msra.mxu0 0.0
        %716 = vmatpush.msra.mxu0 0.0
        %717 = vmatpush.msra.mxu0 %v698
        %718 = vmatmul.f32.gmra.mxu0 %v696
        %v719 = vpop.f32.mrf.mxu0
        %v720 = vadd.f32 0.0, %v719
        %721 = vdwg.mxu0
        %722 = vmatpush.msra.mxu0 0.0
        %723 = vmatpush.msra.mxu0 0.0
        %724 = vmatpush.msra.mxu0 0.0
        %725 = vmatpush.msra.mxu0 0.0
        %726 = vmatpush.msra.mxu0 0.0
        %727 = vmatpush.msra.mxu0 0.0
        %728 = vmatpush.msra.mxu0 0.0
        %729 = vmatpush.msra.mxu0 0.0
        %730 = vmatpush.msra.mxu0 0.0
        %731 = vmatpush.msra.mxu0 0.0
        %732 = vmatpush.msra.mxu0 0.0
        %733 = vmatpush.msra.mxu0 0.0
        %734 = vmatpush.msra.mxu0 0.0
        %735 = vmatpush.msra.mxu0 0.0
        %736 = vmatpush.msra.mxu0 0.0
        %737 = vmatpush.msra.mxu0 %v700
        %738 = vmatmul.f32.gmra.mxu0 %v696
        %v739 = vpop.f32.mrf.mxu0
        %v740 = vadd.f32 0.0, %v739
        %741 = vdwg.mxu0
        %v742 = vadd.f32 %v658, %v720
        %v743 = vadd.f32 %v659, %v740
        %v744 = vld [vmem:[#allocation2 + $0x4] sm:$0xff]
        %v745 = vld [vmem:[#allocation2 + $0xc] sm:$0xf]
        %s746 = scalar_lea.vmem %s2, 14
        %v747 = vld [vmem:[%s746] sm:$0x3]
        %v749 = vperm.slane %v747, 0
        %v750 = vperm.slane %v747, 1
        %v751 = vrot.slane %v750, 4
        %v752 = vsel %vm180, %v749, %v751
        %753 = vrot.lane.b32.xlu0 %v752, 16
        %v754 = vpop.permute.xlu0 %753
        %v755 = vrot.slane %v754, 4
        %v756 = vsel %vm224, %v755, %v754
        %v759 = vmul.f32 %v744, %v756
        %v760 = vmul.f32 %v745, %v755
        %s761 = scalar_lea.vmem %s1, 28
        %v762 = vld [vmem:[%s761] sm:$0xf]
        %765 = vst [vmem:[#allocation1] ss:$2 sm:$0xff] %v759
        %s766 = scalar_lea.vmem [#allocation1], 16
        %767 = vst [vmem:[%s766] ss:$2 sm:$0xff] %v760
        %v768 = vld.sshfl [vmem:[#allocation1] sm:$0xff pattern:$0x75316420]
        %v769 = vld.sshfl [vmem:[#allocation1 + $0x8] sm:$0xff pattern:$0x75316420]
        %v770 = vld.sshfl [vmem:[#allocation1 + $0x10] sm:$0xff pattern:$0x75316420]
        %771 = vrot.lane.b32.xlu0 %v768, 112
        %v772 = vpop.permute.xlu0 %771
        %773 = vrot.lane.b32.xlu0 %v769, 112
        %v774 = vpop.permute.xlu0 %773
        %775 = vrot.lane.b32.xlu0 %v770, 112
        %v776 = vpop.permute.xlu0 %775
        %v777 = vsel %vm202, %v772, %v774
        %v778 = vsel %vm202, %v774, %v776
        %v780 = vsel %vm227, %v762, 0
        %v782 = vsel %vm180, %v777, 0
        %v784 = vsel %vm180, %v778, 0
        %786 = vmatpush.msra.mxu0 0.0
        %787 = vmatpush.msra.mxu0 0.0
        %788 = vmatpush.msra.mxu0 0.0
        %789 = vmatpush.msra.mxu0 0.0
        %790 = vmatpush.msra.mxu0 0.0
        %791 = vmatpush.msra.mxu0 0.0
        %792 = vmatpush.msra.mxu0 0.0
        %793 = vmatpush.msra.mxu0 0.0
        %794 = vmatpush.msra.mxu0 0.0
        %795 = vmatpush.msra.mxu0 0.0
        %796 = vmatpush.msra.mxu0 0.0
        %797 = vmatpush.msra.mxu0 0.0
        %798 = vmatpush.msra.mxu0 0.0
        %799 = vmatpush.msra.mxu0 0.0
        %800 = vmatpush.msra.mxu0 0.0
        %801 = vmatpush.msra.mxu0 %v782
        %802 = vmatmul.f32.gmra.mxu0 %v780
        %v803 = vpop.f32.mrf.mxu0
        %v804 = vadd.f32 0.0, %v803
        %805 = vdwg.mxu0
        %806 = vmatpush.msra.mxu0 0.0
        %807 = vmatpush.msra.mxu0 0.0
        %808 = vmatpush.msra.mxu0 0.0
        %809 = vmatpush.msra.mxu0 0.0
        %810 = vmatpush.msra.mxu0 0.0
        %811 = vmatpush.msra.mxu0 0.0
        %812 = vmatpush.msra.mxu0 0.0
        %813 = vmatpush.msra.mxu0 0.0
        %814 = vmatpush.msra.mxu0 0.0
        %815 = vmatpush.msra.mxu0 0.0
        %816 = vmatpush.msra.mxu0 0.0
        %817 = vmatpush.msra.mxu0 0.0
        %818 = vmatpush.msra.mxu0 0.0
        %819 = vmatpush.msra.mxu0 0.0
        %820 = vmatpush.msra.mxu0 0.0
        %821 = vmatpush.msra.mxu0 %v784
        %822 = vmatmul.f32.gmra.mxu0 %v780
        %v823 = vpop.f32.mrf.mxu0
        %v824 = vadd.f32 0.0, %v823
        %825 = vdwg.mxu0
        %v826 = vadd.f32 %v742, %v804
        %v827 = vadd.f32 %v743, %v824
        %v828 = vld [vmem:[#allocation2 + $0x4] sm:$0xff]
        %v829 = vld [vmem:[#allocation2 + $0xc] sm:$0xf]
        %s830 = scalar_lea.vmem %s2, 16
        %v831 = vld [vmem:[%s830] sm:$0x3]
        %v833 = vperm.slane %v831, 0
        %v834 = vperm.slane %v831, 1
        %v835 = vrot.slane %v834, 4
        %v836 = vsel %vm180, %v833, %v835
        %837 = vrot.lane.b32.xlu0 %v836, 17
        %v838 = vpop.permute.xlu0 %837
        %v839 = vrot.slane %v838, 4
        %v840 = vsel %vm289, %v839, %v838
        %v843 = vmul.f32 %v828, %v840
        %v844 = vmul.f32 %v829, %v839
        %s845 = scalar_lea.vmem %s1, 32
        %v846 = vld [vmem:[%s845] sm:$0xf]
        %849 = vst [vmem:[#allocation1] ss:$2 sm:$0xff] %v843
        %s850 = scalar_lea.vmem [#allocation1], 16
        %851 = vst [vmem:[%s850] ss:$2 sm:$0xff] %v844
        %v852 = vld.sshfl [vmem:[#allocation1] sm:$0xff pattern:$0x75316420]
        %v853 = vld.sshfl [vmem:[#allocation1 + $0x8] sm:$0xff pattern:$0x75316420]
        %v854 = vld.sshfl [vmem:[#allocation1 + $0x10] sm:$0xff pattern:$0x75316420]
        %855 = vrot.lane.b32.xlu0 %v852, 111
        %v856 = vpop.permute.xlu0 %855
        %857 = vrot.lane.b32.xlu0 %v853, 111
        %v858 = vpop.permute.xlu0 %857
        %859 = vrot.lane.b32.xlu0 %v854, 111
        %v860 = vpop.permute.xlu0 %859
        %v861 = vsel %vm185, %v856, %v858
        %v862 = vsel %vm185, %v858, %v860
        %v864 = vsel %vm227, %v846, 0
        %v866 = vsel %vm180, %v861, 0
        %v868 = vsel %vm180, %v862, 0
        %870 = vmatpush.msra.mxu0 0.0
        %871 = vmatpush.msra.mxu0 0.0
        %872 = vmatpush.msra.mxu0 0.0
        %873 = vmatpush.msra.mxu0 0.0
        %874 = vmatpush.msra.mxu0 0.0
        %875 = vmatpush.msra.mxu0 0.0
        %876 = vmatpush.msra.mxu0 0.0
        %877 = vmatpush.msra.mxu0 0.0
        %878 = vmatpush.msra.mxu0 0.0
        %879 = vmatpush.msra.mxu0 0.0
        %880 = vmatpush.msra.mxu0 0.0
        %881 = vmatpush.msra.mxu0 0.0
        %882 = vmatpush.msra.mxu0 0.0
        %883 = vmatpush.msra.mxu0 0.0
        %884 = vmatpush.msra.mxu0 0.0
        %885 = vmatpush.msra.mxu0 %v866
        %886 = vmatmul.f32.gmra.mxu0 %v864
        %v887 = vpop.f32.mrf.mxu0
        %v888 = vadd.f32 0.0, %v887
        %889 = vdwg.mxu0
        %890 = vmatpush.msra.mxu0 0.0
        %891 = vmatpush.msra.mxu0 0.0
        %892 = vmatpush.msra.mxu0 0.0
        %893 = vmatpush.msra.mxu0 0.0
        %894 = vmatpush.msra.mxu0 0.0
        %895 = vmatpush.msra.mxu0 0.0
        %896 = vmatpush.msra.mxu0 0.0
        %897 = vmatpush.msra.mxu0 0.0
        %898 = vmatpush.msra.mxu0 0.0
        %899 = vmatpush.msra.mxu0 0.0
        %900 = vmatpush.msra.mxu0 0.0
        %901 = vmatpush.msra.mxu0 0.0
        %902 = vmatpush.msra.mxu0 0.0
        %903 = vmatpush.msra.mxu0 0.0
        %904 = vmatpush.msra.mxu0 0.0
        %905 = vmatpush.msra.mxu0 %v868
        %906 = vmatmul.f32.gmra.mxu0 %v864
        %v907 = vpop.f32.mrf.mxu0
        %v908 = vadd.f32 0.0, %v907
        %909 = vdwg.mxu0
        %v910 = vadd.f32 %v826, %v888
        %v911 = vadd.f32 %v827, %v908
        %v914 = vrot.slane %v911, 4
        %v915 = vsel %vm180, %v910, %v914
        %917 = vst [vmem:[#allocation2 + $0x4] sm:$0xff] %v915
        %v918 = vld [vmem:[#allocation2] sm:$0xff]
        %v919 = vld [vmem:[#allocation2 + $0x8] sm:$0xf]
        %s920 = scalar_lea.vmem %s2, 18
        %v921 = vld [vmem:[%s920] sm:$0x3]
        %v923 = vperm.slane %v921, 0
        %v924 = vperm.slane %v921, 1
        %v925 = vrot.slane %v924, 4
        %v926 = vsel %vm180, %v923, %v925
        %927 = vrot.lane.b32.xlu0 %v926, 94
        %v928 = vpop.permute.xlu0 %927
        %v929 = vrot.slane %v928, 4
        %vm930 = vcmask 769024
        %v931 = vsel %vm930, %v929, %v928
        %v934 = vmul.f32 %v918, %v931
        %v935 = vmul.f32 %v919, %v929
        %s936 = scalar_lea.vmem %s1, 36
        %v937 = vld [vmem:[%s936] sm:$0xf]
        %s938 = scalar_lea.vmem %s2, 20
        %v939 = vld [vmem:[%s938] sm:$0x3]
        %v941 = vperm.slane %v939, 0
        %v942 = vperm.slane %v939, 1
        %v943 = vrot.slane %v942, 4
        %v944 = vsel %vm180, %v941, %v943
        %945 = vrot.lane.b32.xlu0 %v944, 96
        %v946 = vpop.permute.xlu0 %945
        %v947 = vrot.slane %v946, 4
        %vm948 = vcmask 785408
        %v949 = vsel %vm948, %v947, %v946
        %v952 = vmul.f32 %v918, %v949
        %v953 = vmul.f32 %v919, %v947
        %s954 = scalar_lea.vmem %s1, 40
        %v955 = vld [vmem:[%s954] sm:$0xf]
        %958 = vst [vmem:[#allocation1] ss:$2 sm:$0xff] %v952
        %s959 = scalar_lea.vmem [#allocation1], 16
        %960 = vst [vmem:[%s959] ss:$2 sm:$0xff] %v953
        %v961 = vld.sshfl [vmem:[#allocation1] sm:$0xff pattern:$0x75316420]
        %v962 = vld.sshfl [vmem:[#allocation1 + $0x8] sm:$0xff pattern:$0x75316420]
        %v963 = vld.sshfl [vmem:[#allocation1 + $0x10] sm:$0xff pattern:$0x75316420]
        %964 = vrot.lane.b32.xlu0 %v961, 32
        %v965 = vpop.permute.xlu0 %964
        %966 = vrot.lane.b32.xlu0 %v962, 32
        %v967 = vpop.permute.xlu0 %966
        %968 = vrot.lane.b32.xlu0 %v963, 32
        %v969 = vpop.permute.xlu0 %968
        %vm970 = vcmask 261120
        %v971 = vsel %vm970, %v965, %v967
        %v972 = vsel %vm970, %v967, %v969
        %v974 = vsel %vm227, %v955, 0
        %v976 = vsel %vm180, %v971, 0
        %v978 = vsel %vm180, %v972, 0
        %980 = vmatpush.msra.mxu0 0.0
        %981 = vmatpush.msra.mxu0 0.0
        %982 = vmatpush.msra.mxu0 0.0
        %983 = vmatpush.msra.mxu0 0.0
        %984 = vmatpush.msra.mxu0 0.0
        %985 = vmatpush.msra.mxu0 0.0
        %986 = vmatpush.msra.mxu0 0.0
        %987 = vmatpush.msra.mxu0 0.0
        %988 = vmatpush.msra.mxu0 0.0
        %989 = vmatpush.msra.mxu0 0.0
        %990 = vmatpush.msra.mxu0 0.0
        %991 = vmatpush.msra.mxu0 0.0
        %992 = vmatpush.msra.mxu0 0.0
        %993 = vmatpush.msra.mxu0 0.0
        %994 = vmatpush.msra.mxu0 0.0
        %995 = vmatpush.msra.mxu0 %v976
        %996 = vmatmul.f32.gmra.mxu0 %v974
        %v997 = vpop.f32.mrf.mxu0
        %v998 = vadd.f32 0.0, %v997
        %999 = vdwg.mxu0
        %1000 = vmatpush.msra.mxu0 0.0
        %1001 = vmatpush.msra.mxu0 0.0
        %1002 = vmatpush.msra.mxu0 0.0
        %1003 = vmatpush.msra.mxu0 0.0
        %1004 = vmatpush.msra.mxu0 0.0
        %1005 = vmatpush.msra.mxu0 0.0
        %1006 = vmatpush.msra.mxu0 0.0
        %1007 = vmatpush.msra.mxu0 0.0
        %1008 = vmatpush.msra.mxu0 0.0
        %1009 = vmatpush.msra.mxu0 0.0
        %1010 = vmatpush.msra.mxu0 0.0
        %1011 = vmatpush.msra.mxu0 0.0
        %1012 = vmatpush.msra.mxu0 0.0
        %1013 = vmatpush.msra.mxu0 0.0
        %1014 = vmatpush.msra.mxu0 0.0
        %1015 = vmatpush.msra.mxu0 %v978
        %1016 = vmatmul.f32.gmra.mxu0 %v974
        %v1017 = vpop.f32.mrf.mxu0
        %v1018 = vadd.f32 0.0, %v1017
        %1019 = vdwg.mxu0
        %1022 = vst [vmem:[#allocation1] ss:$2 sm:$0xff] %v934
        %s1023 = scalar_lea.vmem [#allocation1], 16
        %1024 = vst [vmem:[%s1023] ss:$2 sm:$0xff] %v935
        %v1025 = vld.sshfl [vmem:[#allocation1] sm:$0xff pattern:$0x75316420]
        %v1026 = vld.sshfl [vmem:[#allocation1 + $0x8] sm:$0xff pattern:$0x75316420]
        %v1027 = vld.sshfl [vmem:[#allocation1 + $0x10] sm:$0xff pattern:$0x75316420]
        %1028 = vrot.lane.b32.xlu0 %v1025, 34
        %v1029 = vpop.permute.xlu0 %1028
        %1030 = vrot.lane.b32.xlu0 %v1026, 34
        %v1031 = vpop.permute.xlu0 %1030
        %1032 = vrot.lane.b32.xlu0 %v1027, 34
        %v1033 = vpop.permute.xlu0 %1032
        %vm1034 = vcmask 277504
        %v1035 = vsel %vm1034, %v1029, %v1031
        %v1036 = vsel %vm1034, %v1031, %v1033
        %v1038 = vsel %vm227, %v937, 0
        %v1040 = vsel %vm180, %v1035, 0
        %v1042 = vsel %vm180, %v1036, 0
        %1044 = vmatpush.msra.mxu0 0.0
        %1045 = vmatpush.msra.mxu0 0.0
        %1046 = vmatpush.msra.mxu0 0.0
        %1047 = vmatpush.msra.mxu0 0.0
        %1048 = vmatpush.msra.mxu0 0.0
        %1049 = vmatpush.msra.mxu0 0.0
        %1050 = vmatpush.msra.mxu0 0.0
        %1051 = vmatpush.msra.mxu0 0.0
        %1052 = vmatpush.msra.mxu0 0.0
        %1053 = vmatpush.msra.mxu0 0.0
        %1054 = vmatpush.msra.mxu0 0.0
        %1055 = vmatpush.msra.mxu0 0.0
        %1056 = vmatpush.msra.mxu0 0.0
        %1057 = vmatpush.msra.mxu0 0.0
        %1058 = vmatpush.msra.mxu0 0.0
        %1059 = vmatpush.msra.mxu0 %v1040
        %1060 = vmatmul.f32.gmra.mxu0 %v1038
        %v1061 = vpop.f32.mrf.mxu0
        %v1062 = vadd.f32 %v998, %v1061
        %1063 = vdwg.mxu0
        %1064 = vmatpush.msra.mxu0 0.0
        %1065 = vmatpush.msra.mxu0 0.0
        %1066 = vmatpush.msra.mxu0 0.0
        %1067 = vmatpush.msra.mxu0 0.0
        %1068 = vmatpush.msra.mxu0 0.0
        %1069 = vmatpush.msra.mxu0 0.0
        %1070 = vmatpush.msra.mxu0 0.0
        %1071 = vmatpush.msra.mxu0 0.0
        %1072 = vmatpush.msra.mxu0 0.0
        %1073 = vmatpush.msra.mxu0 0.0
        %1074 = vmatpush.msra.mxu0 0.0
        %1075 = vmatpush.msra.mxu0 0.0
        %1076 = vmatpush.msra.mxu0 0.0
        %1077 = vmatpush.msra.mxu0 0.0
        %1078 = vmatpush.msra.mxu0 0.0
        %1079 = vmatpush.msra.mxu0 %v1042
        %1080 = vmatmul.f32.gmra.mxu0 %v1038
        %v1081 = vpop.f32.mrf.mxu0
        %v1082 = vadd.f32 %v1018, %v1081
        %1083 = vdwg.mxu0
        %v1084 = vld [vmem:[#allocation2] sm:$0xff]
        %v1085 = vld [vmem:[#allocation2 + $0x8] sm:$0xf]
        %s1086 = scalar_lea.vmem %s2, 22
        %v1087 = vld [vmem:[%s1086] sm:$0x3]
        %v1089 = vperm.slane %v1087, 0
        %v1090 = vperm.slane %v1087, 1
        %v1091 = vrot.slane %v1090, 4
        %v1092 = vsel %vm180, %v1089, %v1091
        %1093 = vrot.lane.b32.xlu0 %v1092, 98
        %v1094 = vpop.permute.xlu0 %1093
        %v1095 = vrot.slane %v1094, 4
        %vm1096 = vcmask 801792
        %v1097 = vsel %vm1096, %v1095, %v1094
        %v1100 = vmul.f32 %v1084, %v1097
        %v1101 = vmul.f32 %v1085, %v1095
        %s1102 = scalar_lea.vmem %s1, 44
        %v1103 = vld [vmem:[%s1102] sm:$0xf]
        %1106 = vst [vmem:[#allocation1] ss:$2 sm:$0xff] %v1100
        %s1107 = scalar_lea.vmem [#allocation1], 16
        %1108 = vst [vmem:[%s1107] ss:$2 sm:$0xff] %v1101
        %v1109 = vld.sshfl [vmem:[#allocation1] sm:$0xff pattern:$0x75316420]
        %v1110 = vld.sshfl [vmem:[#allocation1 + $0x8] sm:$0xff pattern:$0x75316420]
        %v1111 = vld.sshfl [vmem:[#allocation1 + $0x10] sm:$0xff pattern:$0x75316420]
        %1112 = vrot.lane.b32.xlu0 %v1109, 30
        %v1113 = vpop.permute.xlu0 %1112
        %1114 = vrot.lane.b32.xlu0 %v1110, 30
        %v1115 = vpop.permute.xlu0 %1114
        %1116 = vrot.lane.b32.xlu0 %v1111, 30
        %v1117 = vpop.permute.xlu0 %1116
        %vm1118 = vcmask 244736
        %v1119 = vsel %vm1118, %v1113, %v1115
        %v1120 = vsel %vm1118, %v1115, %v1117
        %v1122 = vsel %vm227, %v1103, 0
        %v1124 = vsel %vm180, %v1119, 0
        %v1126 = vsel %vm180, %v1120, 0
        %1128 = vmatpush.msra.mxu0 0.0
        %1129 = vmatpush.msra.mxu0 0.0
        %1130 = vmatpush.msra.mxu0 0.0
        %1131 = vmatpush.msra.mxu0 0.0
        %1132 = vmatpush.msra.mxu0 0.0
        %1133 = vmatpush.msra.mxu0 0.0
        %1134 = vmatpush.msra.mxu0 0.0
        %1135 = vmatpush.msra.mxu0 0.0
        %1136 = vmatpush.msra.mxu0 0.0
        %1137 = vmatpush.msra.mxu0 0.0
        %1138 = vmatpush.msra.mxu0 0.0
        %1139 = vmatpush.msra.mxu0 0.0
        %1140 = vmatpush.msra.mxu0 0.0
        %1141 = vmatpush.msra.mxu0 0.0
        %1142 = vmatpush.msra.mxu0 0.0
        %1143 = vmatpush.msra.mxu0 %v1124
        %1144 = vmatmul.f32.gmra.mxu0 %v1122
        %v1145 = vpop.f32.mrf.mxu0
        %v1146 = vadd.f32 0.0, %v1145
        %1147 = vdwg.mxu0
        %1148 = vmatpush.msra.mxu0 0.0
        %1149 = vmatpush.msra.mxu0 0.0
        %1150 = vmatpush.msra.mxu0 0.0
        %1151 = vmatpush.msra.mxu0 0.0
        %1152 = vmatpush.msra.mxu0 0.0
        %1153 = vmatpush.msra.mxu0 0.0
        %1154 = vmatpush.msra.mxu0 0.0
        %1155 = vmatpush.msra.mxu0 0.0
        %1156 = vmatpush.msra.mxu0 0.0
        %1157 = vmatpush.msra.mxu0 0.0
        %1158 = vmatpush.msra.mxu0 0.0
        %1159 = vmatpush.msra.mxu0 0.0
        %1160 = vmatpush.msra.mxu0 0.0
        %1161 = vmatpush.msra.mxu0 0.0
        %1162 = vmatpush.msra.mxu0 0.0
        %1163 = vmatpush.msra.mxu0 %v1126
        %1164 = vmatmul.f32.gmra.mxu0 %v1122
        %v1165 = vpop.f32.mrf.mxu0
        %v1166 = vadd.f32 0.0, %v1165
        %1167 = vdwg.mxu0
        %v1168 = vadd.f32 %v1062, %v1146
        %v1169 = vadd.f32 %v1082, %v1166
        %v1170 = vld [vmem:[#allocation2] sm:$0xff]
        %v1171 = vld [vmem:[#allocation2 + $0x8] sm:$0xf]
        %s1172 = scalar_lea.vmem %s2, 24
        %v1173 = vld [vmem:[%s1172] sm:$0x3]
        %v1175 = vperm.slane %v1173, 0
        %v1176 = vperm.slane %v1173, 1
        %v1177 = vrot.slane %v1176, 4
        %v1178 = vsel %vm180, %v1175, %v1177
        %1179 = vrot.lane.b32.xlu0 %v1178, 126
        %v1180 = vpop.permute.xlu0 %1179
        %v1181 = vrot.slane %v1180, 4
        %vm1182 = vcmask 1031168
        %v1183 = vsel %vm1182, %v1181, %v1180
        %v1186 = vmul.f32 %v1170, %v1183
        %v1187 = vmul.f32 %v1171, %v1181
        %s1188 = scalar_lea.vmem %s1, 48
        %v1189 = vld [vmem:[%s1188] sm:$0xf]
        %1192 = vst [vmem:[#allocation1] ss:$2 sm:$0xff] %v1186
        %s1193 = scalar_lea.vmem [#allocation1], 16
        %1194 = vst [vmem:[%s1193] ss:$2 sm:$0xff] %v1187
        %v1195 = vld.sshfl [vmem:[#allocation1] sm:$0xff pattern:$0x75316420]
        %v1196 = vld.sshfl [vmem:[#allocation1 + $0x8] sm:$0xff pattern:$0x75316420]
        %v1197 = vld.sshfl [vmem:[#allocation1 + $0x10] sm:$0xff pattern:$0x75316420]
        %1198 = vrot.lane.b32.xlu0 %v1195, 2
        %v1199 = vpop.permute.xlu0 %1198
        %1200 = vrot.lane.b32.xlu0 %v1196, 2
        %v1201 = vpop.permute.xlu0 %1200
        %1202 = vrot.lane.b32.xlu0 %v1197, 2
        %v1203 = vpop.permute.xlu0 %1202
        %vm1204 = vcmask 15360
        %v1205 = vsel %vm1204, %v1199, %v1201
        %v1206 = vsel %vm1204, %v1201, %v1203
        %v1208 = vsel %vm227, %v1189, 0
        %v1210 = vsel %vm180, %v1205, 0
        %v1212 = vsel %vm180, %v1206, 0
        %1214 = vmatpush.msra.mxu0 0.0
        %1215 = vmatpush.msra.mxu0 0.0
        %1216 = vmatpush.msra.mxu0 0.0
        %1217 = vmatpush.msra.mxu0 0.0
        %1218 = vmatpush.msra.mxu0 0.0
        %1219 = vmatpush.msra.mxu0 0.0
        %1220 = vmatpush.msra.mxu0 0.0
        %1221 = vmatpush.msra.mxu0 0.0
        %1222 = vmatpush.msra.mxu0 0.0
        %1223 = vmatpush.msra.mxu0 0.0
        %1224 = vmatpush.msra.mxu0 0.0
        %1225 = vmatpush.msra.mxu0 0.0
        %1226 = vmatpush.msra.mxu0 0.0
        %1227 = vmatpush.msra.mxu0 0.0
        %1228 = vmatpush.msra.mxu0 0.0
        %1229 = vmatpush.msra.mxu0 %v1210
        %1230 = vmatmul.f32.gmra.mxu0 %v1208
        %v1231 = vpop.f32.mrf.mxu0
        %v1232 = vadd.f32 0.0, %v1231
        %1233 = vdwg.mxu0
        %1234 = vmatpush.msra.mxu0 0.0
        %1235 = vmatpush.msra.mxu0 0.0
        %1236 = vmatpush.msra.mxu0 0.0
        %1237 = vmatpush.msra.mxu0 0.0
        %1238 = vmatpush.msra.mxu0 0.0
        %1239 = vmatpush.msra.mxu0 0.0
        %1240 = vmatpush.msra.mxu0 0.0
        %1241 = vmatpush.msra.mxu0 0.0
        %1242 = vmatpush.msra.mxu0 0.0
        %1243 = vmatpush.msra.mxu0 0.0
        %1244 = vmatpush.msra.mxu0 0.0
        %1245 = vmatpush.msra.mxu0 0.0
        %1246 = vmatpush.msra.mxu0 0.0
        %1247 = vmatpush.msra.mxu0 0.0
        %1248 = vmatpush.msra.mxu0 0.0
        %1249 = vmatpush.msra.mxu0 %v1212
        %1250 = vmatmul.f32.gmra.mxu0 %v1208
        %v1251 = vpop.f32.mrf.mxu0
        %v1252 = vadd.f32 0.0, %v1251
        %1253 = vdwg.mxu0
        %v1254 = vadd.f32 %v1168, %v1232
        %v1255 = vadd.f32 %v1169, %v1252
        %v1256 = vld [vmem:[#allocation2 + $0x4] sm:$0xff]
        %s1257 = scalar_lea.vmem %s2, 26
        %v1258 = vld [vmem:[%s1257] sm:$0x3]
        %v1260 = vperm.slane %v1258, 0
        %v1261 = vperm.slane %v1258, 1
        %v1262 = vrot.slane %v1261, 4
        %v1263 = vsel %vm180, %v1260, %v1262
        %v1265 = vmul.f32 %v1256, %v1263
        %s1266 = scalar_lea.vmem %s1, 52
        %v1267 = vld [vmem:[%s1266] sm:$0xf]
        %1269 = vst [vmem:[#allocation1] ss:$2 sm:$0xff] %v1265
        %v1270 = vld.sshfl [vmem:[#allocation1] sm:$0xff pattern:$0x75316420]
        %v1271 = vld.sshfl [vmem:[#allocation1 + $0x8] sm:$0xff pattern:$0x75316420]
        %v1273 = vsel %vm227, %v1267, 0
        %v1275 = vsel %vm180, %v1270, 0
        %v1277 = vsel %vm180, %v1271, 0
        %1279 = vmatpush.msra.mxu0 0.0
        %1280 = vmatpush.msra.mxu0 0.0
        %1281 = vmatpush.msra.mxu0 0.0
        %1282 = vmatpush.msra.mxu0 0.0
        %1283 = vmatpush.msra.mxu0 0.0
        %1284 = vmatpush.msra.mxu0 0.0
        %1285 = vmatpush.msra.mxu0 0.0
        %1286 = vmatpush.msra.mxu0 0.0
        %1287 = vmatpush.msra.mxu0 0.0
        %1288 = vmatpush.msra.mxu0 0.0
        %1289 = vmatpush.msra.mxu0 0.0
        %1290 = vmatpush.msra.mxu0 0.0
        %1291 = vmatpush.msra.mxu0 0.0
        %1292 = vmatpush.msra.mxu0 0.0
        %1293 = vmatpush.msra.mxu0 0.0
        %1294 = vmatpush.msra.mxu0 %v1275
        %1295 = vmatmul.f32.gmra.mxu0 %v1273
        %v1296 = vpop.f32.mrf.mxu0
        %v1297 = vadd.f32 0.0, %v1296
        %1298 = vdwg.mxu0
        %1299 = vmatpush.msra.mxu0 0.0
        %1300 = vmatpush.msra.mxu0 0.0
        %1301 = vmatpush.msra.mxu0 0.0
        %1302 = vmatpush.msra.mxu0 0.0
        %1303 = vmatpush.msra.mxu0 0.0
        %1304 = vmatpush.msra.mxu0 0.0
        %1305 = vmatpush.msra.mxu0 0.0
        %1306 = vmatpush.msra.mxu0 0.0
        %1307 = vmatpush.msra.mxu0 0.0
        %1308 = vmatpush.msra.mxu0 0.0
        %1309 = vmatpush.msra.mxu0 0.0
        %1310 = vmatpush.msra.mxu0 0.0
        %1311 = vmatpush.msra.mxu0 0.0
        %1312 = vmatpush.msra.mxu0 0.0
        %1313 = vmatpush.msra.mxu0 0.0
        %1314 = vmatpush.msra.mxu0 %v1277
        %1315 = vmatmul.f32.gmra.mxu0 %v1273
        %v1316 = vpop.f32.mrf.mxu0
        %v1317 = vadd.f32 0.0, %v1316
        %1318 = vdwg.mxu0
        %v1319 = vadd.f32 %v1254, %v1297
        %v1320 = vadd.f32 %v1255, %v1317
        %v1321 = vld [vmem:[#allocation2 + $0x4] sm:$0xff]
        %v1322 = vld [vmem:[#allocation2 + $0xc] sm:$0xf]
        %s1323 = scalar_lea.vmem %s2, 28
        %v1324 = vld [vmem:[%s1323] sm:$0x3]
        %v1326 = vperm.slane %v1324, 0
        %v1327 = vperm.slane %v1324, 1
        %v1328 = vrot.slane %v1327, 4
        %v1329 = vsel %vm180, %v1326, %v1328
        %1330 = vrot.lane.b32.xlu0 %v1329, 2
        %v1331 = vpop.permute.xlu0 %1330
        %v1332 = vrot.slane %v1331, 4
        %v1333 = vsel %vm1204, %v1332, %v1331
        %v1336 = vmul.f32 %v1321, %v1333
        %v1337 = vmul.f32 %v1322, %v1332
        %s1338 = scalar_lea.vmem %s1, 56
        %v1339 = vld [vmem:[%s1338] sm:$0xf]
        %1342 = vst [vmem:[#allocation1] ss:$2 sm:$0xff] %v1336
        %s1343 = scalar_lea.vmem [#allocation1], 16
        %1344 = vst [vmem:[%s1343] ss:$2 sm:$0xff] %v1337
        %v1345 = vld.sshfl [vmem:[#allocation1] sm:$0xff pattern:$0x75316420]
        %v1346 = vld.sshfl [vmem:[#allocation1 + $0x8] sm:$0xff pattern:$0x75316420]
        %v1347 = vld.sshfl [vmem:[#allocation1 + $0x10] sm:$0xff pattern:$0x75316420]
        %1348 = vrot.lane.b32.xlu0 %v1345, 126
        %v1349 = vpop.permute.xlu0 %1348
        %1350 = vrot.lane.b32.xlu0 %v1346, 126
        %v1351 = vpop.permute.xlu0 %1350
        %1352 = vrot.lane.b32.xlu0 %v1347, 126
        %v1353 = vpop.permute.xlu0 %1352
        %v1354 = vsel %vm1182, %v1349, %v1351
        %v1355 = vsel %vm1182, %v1351, %v1353
        %v1357 = vsel %vm227, %v1339, 0
        %v1359 = vsel %vm180, %v1354, 0
        %v1361 = vsel %vm180, %v1355, 0
        %1363 = vmatpush.msra.mxu0 0.0
        %1364 = vmatpush.msra.mxu0 0.0
        %1365 = vmatpush.msra.mxu0 0.0
        %1366 = vmatpush.msra.mxu0 0.0
        %1367 = vmatpush.msra.mxu0 0.0
        %1368 = vmatpush.msra.mxu0 0.0
        %1369 = vmatpush.msra.mxu0 0.0
        %1370 = vmatpush.msra.mxu0 0.0
        %1371 = vmatpush.msra.mxu0 0.0
        %1372 = vmatpush.msra.mxu0 0.0
        %1373 = vmatpush.msra.mxu0 0.0
        %1374 = vmatpush.msra.mxu0 0.0
        %1375 = vmatpush.msra.mxu0 0.0
        %1376 = vmatpush.msra.mxu0 0.0
        %1377 = vmatpush.msra.mxu0 0.0
        %1378 = vmatpush.msra.mxu0 %v1359
        %1379 = vmatmul.f32.gmra.mxu0 %v1357
        %v1380 = vpop.f32.mrf.mxu0
        %v1381 = vadd.f32 0.0, %v1380
        %1382 = vdwg.mxu0
        %1383 = vmatpush.msra.mxu0 0.0
        %1384 = vmatpush.msra.mxu0 0.0
        %1385 = vmatpush.msra.mxu0 0.0
        %1386 = vmatpush.msra.mxu0 0.0
        %1387 = vmatpush.msra.mxu0 0.0
        %1388 = vmatpush.msra.mxu0 0.0
        %1389 = vmatpush.msra.mxu0 0.0
        %1390 = vmatpush.msra.mxu0 0.0
        %1391 = vmatpush.msra.mxu0 0.0
        %1392 = vmatpush.msra.mxu0 0.0
        %1393 = vmatpush.msra.mxu0 0.0
        %1394 = vmatpush.msra.mxu0 0.0
        %1395 = vmatpush.msra.mxu0 0.0
        %1396 = vmatpush.msra.mxu0 0.0
        %1397 = vmatpush.msra.mxu0 0.0
        %1398 = vmatpush.msra.mxu0 %v1361
        %1399 = vmatmul.f32.gmra.mxu0 %v1357
        %v1400 = vpop.f32.mrf.mxu0
        %v1401 = vadd.f32 0.0, %v1400
        %1402 = vdwg.mxu0
        %v1403 = vadd.f32 %v1319, %v1381
        %v1404 = vadd.f32 %v1320, %v1401
        %v1405 = vld [vmem:[#allocation2 + $0x4] sm:$0xff]
        %v1406 = vld [vmem:[#allocation2 + $0xc] sm:$0xf]
        %s1407 = scalar_lea.vmem %s2, 30
        %v1408 = vld [vmem:[%s1407] sm:$0x3]
        %v1410 = vperm.slane %v1408, 0
        %v1411 = vperm.slane %v1408, 1
        %v1412 = vrot.slane %v1411, 4
        %v1413 = vsel %vm180, %v1410, %v1412
        %1414 = vrot.lane.b32.xlu0 %v1413, 30
        %v1415 = vpop.permute.xlu0 %1414
        %v1416 = vrot.slane %v1415, 4
        %v1417 = vsel %vm1118, %v1416, %v1415
        %v1420 = vmul.f32 %v1405, %v1417
        %v1421 = vmul.f32 %v1406, %v1416
        %s1422 = scalar_lea.vmem %s1, 60
        %v1423 = vld [vmem:[%s1422] sm:$0xf]
        %1426 = vst [vmem:[#allocation1] ss:$2 sm:$0xff] %v1420
        %s1427 = scalar_lea.vmem [#allocation1], 16
        %1428 = vst [vmem:[%s1427] ss:$2 sm:$0xff] %v1421
        %v1429 = vld.sshfl [vmem:[#allocation1] sm:$0xff pattern:$0x75316420]
        %v1430 = vld.sshfl [vmem:[#allocation1 + $0x8] sm:$0xff pattern:$0x75316420]
        %v1431 = vld.sshfl [vmem:[#allocation1 + $0x10] sm:$0xff pattern:$0x75316420]
        %1432 = vrot.lane.b32.xlu0 %v1429, 98
        %v1433 = vpop.permute.xlu0 %1432
        %1434 = vrot.lane.b32.xlu0 %v1430, 98
        %v1435 = vpop.permute.xlu0 %1434
        %1436 = vrot.lane.b32.xlu0 %v1431, 98
        %v1437 = vpop.permute.xlu0 %1436
        %v1438 = vsel %vm1096, %v1433, %v1435
        %v1439 = vsel %vm1096, %v1435, %v1437
        %v1441 = vsel %vm227, %v1423, 0
        %v1443 = vsel %vm180, %v1438, 0
        %v1445 = vsel %vm180, %v1439, 0
        %1447 = vmatpush.msra.mxu0 0.0
        %1448 = vmatpush.msra.mxu0 0.0
        %1449 = vmatpush.msra.mxu0 0.0
        %1450 = vmatpush.msra.mxu0 0.0
        %1451 = vmatpush.msra.mxu0 0.0
        %1452 = vmatpush.msra.mxu0 0.0
        %1453 = vmatpush.msra.mxu0 0.0
        %1454 = vmatpush.msra.mxu0 0.0
        %1455 = vmatpush.msra.mxu0 0.0
        %1456 = vmatpush.msra.mxu0 0.0
        %1457 = vmatpush.msra.mxu0 0.0
        %1458 = vmatpush.msra.mxu0 0.0
        %1459 = vmatpush.msra.mxu0 0.0
        %1460 = vmatpush.msra.mxu0 0.0
        %1461 = vmatpush.msra.mxu0 0.0
        %1462 = vmatpush.msra.mxu0 %v1443
        %1463 = vmatmul.f32.gmra.mxu0 %v1441
        %v1464 = vpop.f32.mrf.mxu0
        %v1465 = vadd.f32 0.0, %v1464
        %1466 = vdwg.mxu0
        %1467 = vmatpush.msra.mxu0 0.0
        %1468 = vmatpush.msra.mxu0 0.0
        %1469 = vmatpush.msra.mxu0 0.0
        %1470 = vmatpush.msra.mxu0 0.0
        %1471 = vmatpush.msra.mxu0 0.0
        %1472 = vmatpush.msra.mxu0 0.0
        %1473 = vmatpush.msra.mxu0 0.0
        %1474 = vmatpush.msra.mxu0 0.0
        %1475 = vmatpush.msra.mxu0 0.0
        %1476 = vmatpush.msra.mxu0 0.0
        %1477 = vmatpush.msra.mxu0 0.0
        %1478 = vmatpush.msra.mxu0 0.0
        %1479 = vmatpush.msra.mxu0 0.0
        %1480 = vmatpush.msra.mxu0 0.0
        %1481 = vmatpush.msra.mxu0 0.0
        %1482 = vmatpush.msra.mxu0 %v1445
        %1483 = vmatmul.f32.gmra.mxu0 %v1441
        %v1484 = vpop.f32.mrf.mxu0
        %v1485 = vadd.f32 0.0, %v1484
        %1486 = vdwg.mxu0
        %v1487 = vadd.f32 %v1403, %v1465
        %v1488 = vadd.f32 %v1404, %v1485
        %v1489 = vld [vmem:[#allocation2 + $0x4] sm:$0xff]
        %v1490 = vld [vmem:[#allocation2 + $0xc] sm:$0xf]
        %s1491 = scalar_lea.vmem %s2, 32
        %v1492 = vld [vmem:[%s1491] sm:$0x3]
        %v1494 = vperm.slane %v1492, 0
        %v1495 = vperm.slane %v1492, 1
        %v1496 = vrot.slane %v1495, 4
        %v1497 = vsel %vm180, %v1494, %v1496
        %1498 = vrot.lane.b32.xlu0 %v1497, 32
        %v1499 = vpop.permute.xlu0 %1498
        %v1500 = vrot.slane %v1499, 4
        %v1501 = vsel %vm970, %v1500, %v1499
        %v1504 = vmul.f32 %v1489, %v1501
        %v1505 = vmul.f32 %v1490, %v1500
        %s1506 = scalar_lea.vmem %s1, 64
        %v1507 = vld [vmem:[%s1506] sm:$0xf]
        %1510 = vst [vmem:[#allocation1] ss:$2 sm:$0xff] %v1504
        %s1511 = scalar_lea.vmem [#allocation1], 16
        %1512 = vst [vmem:[%s1511] ss:$2 sm:$0xff] %v1505
        %v1513 = vld.sshfl [vmem:[#allocation1] sm:$0xff pattern:$0x75316420]
        %v1514 = vld.sshfl [vmem:[#allocation1 + $0x8] sm:$0xff pattern:$0x75316420]
        %v1515 = vld.sshfl [vmem:[#allocation1 + $0x10] sm:$0xff pattern:$0x75316420]
        %1516 = vrot.lane.b32.xlu0 %v1513, 96
        %v1517 = vpop.permute.xlu0 %1516
        %1518 = vrot.lane.b32.xlu0 %v1514, 96
        %v1519 = vpop.permute.xlu0 %1518
        %1520 = vrot.lane.b32.xlu0 %v1515, 96
        %v1521 = vpop.permute.xlu0 %1520
        %v1522 = vsel %vm948, %v1517, %v1519
        %v1523 = vsel %vm948, %v1519, %v1521
        %v1525 = vsel %vm227, %v1507, 0
        %v1527 = vsel %vm180, %v1522, 0
        %v1529 = vsel %vm180, %v1523, 0
        %1531 = vmatpush.msra.mxu0 0.0
        %1532 = vmatpush.msra.mxu0 0.0
        %1533 = vmatpush.msra.mxu0 0.0
        %1534 = vmatpush.msra.mxu0 0.0
        %1535 = vmatpush.msra.mxu0 0.0
        %1536 = vmatpush.msra.mxu0 0.0
        %1537 = vmatpush.msra.mxu0 0.0
        %1538 = vmatpush.msra.mxu0 0.0
        %1539 = vmatpush.msra.mxu0 0.0
        %1540 = vmatpush.msra.mxu0 0.0
        %1541 = vmatpush.msra.mxu0 0.0
        %1542 = vmatpush.msra.mxu0 0.0
        %1543 = vmatpush.msra.mxu0 0.0
        %1544 = vmatpush.msra.mxu0 0.0
        %1545 = vmatpush.msra.mxu0 0.0
        %1546 = vmatpush.msra.mxu0 %v1527
        %1547 = vmatmul.f32.gmra.mxu0 %v1525
        %v1548 = vpop.f32.mrf.mxu0
        %v1549 = vadd.f32 0.0, %v1548
        %1550 = vdwg.mxu0
        %1551 = vmatpush.msra.mxu0 0.0
        %1552 = vmatpush.msra.mxu0 0.0
        %1553 = vmatpush.msra.mxu0 0.0
        %1554 = vmatpush.msra.mxu0 0.0
        %1555 = vmatpush.msra.mxu0 0.0
        %1556 = vmatpush.msra.mxu0 0.0
        %1557 = vmatpush.msra.mxu0 0.0
        %1558 = vmatpush.msra.mxu0 0.0
        %1559 = vmatpush.msra.mxu0 0.0
        %1560 = vmatpush.msra.mxu0 0.0
        %1561 = vmatpush.msra.mxu0 0.0
        %1562 = vmatpush.msra.mxu0 0.0
        %1563 = vmatpush.msra.mxu0 0.0
        %1564 = vmatpush.msra.mxu0 0.0
        %1565 = vmatpush.msra.mxu0 0.0
        %1566 = vmatpush.msra.mxu0 %v1529
        %1567 = vmatmul.f32.gmra.mxu0 %v1525
        %v1568 = vpop.f32.mrf.mxu0
        %v1569 = vadd.f32 0.0, %v1568
        %1570 = vdwg.mxu0
        %v1571 = vadd.f32 %v1487, %v1549
        %v1572 = vadd.f32 %v1488, %v1569
        %v1573 = vld [vmem:[#allocation2 + $0x4] sm:$0xff]
        %v1574 = vld [vmem:[#allocation2 + $0xc] sm:$0xf]
        %s1575 = scalar_lea.vmem %s2, 34
        %v1576 = vld [vmem:[%s1575] sm:$0x3]
        %v1578 = vperm.slane %v1576, 0
        %v1579 = vperm.slane %v1576, 1
        %v1580 = vrot.slane %v1579, 4
        %v1581 = vsel %vm180, %v1578, %v1580
        %1582 = vrot.lane.b32.xlu0 %v1581, 34
        %v1583 = vpop.permute.xlu0 %1582
        %v1584 = vrot.slane %v1583, 4
        %v1585 = vsel %vm1034, %v1584, %v1583
        %v1588 = vmul.f32 %v1573, %v1585
        %v1589 = vmul.f32 %v1574, %v1584
        %s1590 = scalar_lea.vmem %s1, 68
        %v1591 = vld [vmem:[%s1590] sm:$0xf]
        %1594 = vst [vmem:[#allocation1] ss:$2 sm:$0xff] %v1588
        %s1595 = scalar_lea.vmem [#allocation1], 16
        %1596 = vst [vmem:[%s1595] ss:$2 sm:$0xff] %v1589
        %v1597 = vld.sshfl [vmem:[#allocation1] sm:$0xff pattern:$0x75316420]
        %v1598 = vld.sshfl [vmem:[#allocation1 + $0x8] sm:$0xff pattern:$0x75316420]
        %v1599 = vld.sshfl [vmem:[#allocation1 + $0x10] sm:$0xff pattern:$0x75316420]
        %1600 = vrot.lane.b32.xlu0 %v1597, 94
        %v1601 = vpop.permute.xlu0 %1600
        %1602 = vrot.lane.b32.xlu0 %v1598, 94
        %v1603 = vpop.permute.xlu0 %1602
        %1604 = vrot.lane.b32.xlu0 %v1599, 94
        %v1605 = vpop.permute.xlu0 %1604
        %v1606 = vsel %vm930, %v1601, %v1603
        %v1607 = vsel %vm930, %v1603, %v1605
        %v1609 = vsel %vm227, %v1591, 0
        %v1611 = vsel %vm180, %v1606, 0
        %v1613 = vsel %vm180, %v1607, 0
        %1615 = vmatpush.msra.mxu0 0.0
        %1616 = vmatpush.msra.mxu0 0.0
        %1617 = vmatpush.msra.mxu0 0.0
        %1618 = vmatpush.msra.mxu0 0.0
        %1619 = vmatpush.msra.mxu0 0.0
        %1620 = vmatpush.msra.mxu0 0.0
        %1621 = vmatpush.msra.mxu0 0.0
        %1622 = vmatpush.msra.mxu0 0.0
        %1623 = vmatpush.msra.mxu0 0.0
        %1624 = vmatpush.msra.mxu0 0.0
        %1625 = vmatpush.msra.mxu0 0.0
        %1626 = vmatpush.msra.mxu0 0.0
        %1627 = vmatpush.msra.mxu0 0.0
        %1628 = vmatpush.msra.mxu0 0.0
        %1629 = vmatpush.msra.mxu0 0.0
        %1630 = vmatpush.msra.mxu0 %v1611
        %1631 = vmatmul.f32.gmra.mxu0 %v1609
        %v1632 = vpop.f32.mrf.mxu0
        %v1633 = vadd.f32 0.0, %v1632
        %1634 = vdwg.mxu0
        %1635 = vmatpush.msra.mxu0 0.0
        %1636 = vmatpush.msra.mxu0 0.0
        %1637 = vmatpush.msra.mxu0 0.0
        %1638 = vmatpush.msra.mxu0 0.0
        %1639 = vmatpush.msra.mxu0 0.0
        %1640 = vmatpush.msra.mxu0 0.0
        %1641 = vmatpush.msra.mxu0 0.0
        %1642 = vmatpush.msra.mxu0 0.0
        %1643 = vmatpush.msra.mxu0 0.0
        %1644 = vmatpush.msra.mxu0 0.0
        %1645 = vmatpush.msra.mxu0 0.0
        %1646 = vmatpush.msra.mxu0 0.0
        %1647 = vmatpush.msra.mxu0 0.0
        %1648 = vmatpush.msra.mxu0 0.0
        %1649 = vmatpush.msra.mxu0 0.0
        %1650 = vmatpush.msra.mxu0 %v1613
        %1651 = vmatmul.f32.gmra.mxu0 %v1609
        %v1652 = vpop.f32.mrf.mxu0
        %v1653 = vadd.f32 0.0, %v1652
        %1654 = vdwg.mxu0
        %v1655 = vadd.f32 %v1571, %v1633
        %v1656 = vadd.f32 %v1572, %v1653
        %v1659 = vrot.slane %v1656, 4
        %v1660 = vsel %vm180, %v1655, %v1659
        %1662 = vst [vmem:[%s163] sm:$0xff] %v1660
        %s1663 = sand.u32 %s93, 1
        %s1664 = scalar_lea.sflag [#allocation4], %s1663
        %s1665 = sand.u32 %s93, 1
        %s1666 = smul.addr %s1665, 8
        %s1667 = scalar_lea.vmem [#allocation3], %s1666
        // Predicated region
        $region33: #{tpu_custom_call.1} parent=31 // pred_check
          %p1668 = pneg %p103
        $region34: #{tpu_custom_call.1} parent=31 // pred_check_branch
          %1670 = sbr.rel (%p1668) target = $region36
        $region35: #{tpu_custom_call.1} parent=31 // pred_region
          %1672 = vsyncadd %s1664, 0
          %s1673 = smul.addr %s17, 2
          %s1674 = smul.addr %s1673, 4
          %s1675 = scalar_lea.hbm %s3, %s1674
          %s1677 = sshll.u32 %s1667, 4
          %s1678 = int_to_ptr.vmem [resolvable:$true] %s1677
          %s1679 = sshll.u32 %s1675, 4
          %s1680 = int_to_ptr.hbm [resolvable:$true] %s1679
          %1682 = dma.vmem_to_hbm [thread:$0]  %s1678, 128, %s1680, %s1664
        $region36: #{tpu_custom_call.1} parent=31 // pred_fallthru
          _
      $region32: #{tpu_custom_call.1} parent=5 // pred_fallthru
        _
      %p1683 = scmp.le.s32.totalorder 2, %s12
      // Predicated region
      $region37: #{tpu_custom_call.1} parent=5 // pred_check
        %p1684 = pneg %p1683
      $region38: #{tpu_custom_call.1} parent=5 // pred_check_branch
        %1686 = sbr.rel (%p1684) target = $region40
      $region39: #{tpu_custom_call.1} parent=5 // pred_region
        %s1687 = ssub.s32 %s12, 2
        // Predicated region
        $region41: #{tpu_custom_call.1} parent=39 // pred_check
          %p1688 = pneg %p109
        $region42: #{tpu_custom_call.1} parent=39 // pred_check_branch
          %1690 = sbr.rel (%p1688) target = $region44
        $region43: #{tpu_custom_call.1} parent=39 // pred_region
          %s1691 = sand.u32 %s94, 1
          %s1692 = scalar_lea.sflag [#allocation4], %s1691
          %s1693 = sand.u32 %s94, 1
          %s1694 = smul.addr %s1693, 8
          %s1695 = scalar_lea.vmem [#allocation3], %s1694
          %1697 = dma.done %s1692, 128
        $region44: #{tpu_custom_call.1} parent=39 // pred_fallthru
          _
      $region40: #{tpu_custom_call.1} parent=5 // pred_fallthru
        _
    $region6: #{tpu_custom_call.1} parent=1 // loop_footer
      %s16 = sadd.s32 1, %s12
    $region7: #{tpu_custom_call.1} parent=1 // loop_footer_branch
      %11 = sbr.rel target = $region3
    $region8: #{tpu_custom_call.1} parent=1 // loop_exit
      _
    %1698 = vsyncpa [#allocation4], 1
    %s1699 = scalar_lea.sflag [#allocation4], 1
    %1700 = vsyncpa %s1699, 1

</llo_original>
